<compile_context>
chip_gen: v6e
topology: v6e:2x2x1
jax: 0.10.0
libtpu: 0.0.40
codegen_flags: <defaults>
</compile_context>

<pallas_src>
import functools

import jax
import jax.numpy as jnp
from jax import lax
from jax.experimental import pallas as pl
from jax.experimental.pallas import tpu as pltpu


# ---------------------------------------------------------------------------
# Fused kernel: QKV proj + causal MHA (all batches, all heads) + out proj
# ---------------------------------------------------------------------------

def _fused_mha_kernel(x_ref, wa_ref, ba_ref, wp_ref, bp_ref, o_ref, *,
                      batch, seq, num_heads, kdim, vdim):
    B, T, H = batch, seq, num_heads
    embed = o_ref.shape[-1]

    # --- c_attn on the flattened (B*T, E) row slab: one full-width matmul ---
    x2 = x_ref[...]                                                # (B*T, E)
    qkv2 = jnp.dot(x2, wa_ref[...], preferred_element_type=jnp.float32)
    qkv2 = qkv2 + ba_ref[...]                                      # (B*T, 2*H*kd + H*vd)
    # T == 8 -> the (B*T, D) -> (B, T, D) split is sublane-tile aligned.
    qkv = qkv2.reshape(B, T, 2 * H * kdim + H * vdim)

    # --- finite additive causal bias, shared across heads & batches ---------
    row = lax.broadcasted_iota(jnp.int32, (T, T), 0)
    col = lax.broadcasted_iota(jnp.int32, (T, T), 1)
    causal_bias = jnp.where(col <= row, 0.0, -1e30).astype(jnp.float32)

    k_off = H * kdim
    v_off = 2 * H * kdim

    # --- per-head attention; output projection accumulated per head ---------
    out2 = jnp.zeros((B * T, embed), jnp.float32)
    for h in range(H):                                             # static unroll (H=4)
        # TODO(synk): 8-wide lane slices; pad heads to 128-lane tiles for prod.
        q = qkv[:, :, h * kdim:(h + 1) * kdim]                     # (B, T, kd), scale pre-folded
        k = qkv[:, :, k_off + h * kdim:k_off + (h + 1) * kdim]     # (B, T, kd)
        v = qkv[:, :, v_off + h * vdim:v_off + (h + 1) * vdim]     # (B, T, vd)

        # Batched over B; no transposed copy of k is materialized.
        s = jnp.einsum("btk,bik->bti", q, k,
                       preferred_element_type=jnp.float32)         # (B, T, T)
        s = s + causal_bias

        m = jnp.max(s, axis=-1, keepdims=True)
        e = jnp.exp(s - m)
        denom = jnp.sum(e, axis=-1, keepdims=True)
        ctx = jnp.einsum("bti,biv->btv", e, v,
                         preferred_element_type=jnp.float32)        # (B, T, vd)
        # Deferred normalization: scale the (T, vd) context, not the (T, T) probs.
        # approx=False keeps the 1e-5 f32 check; use approx=True (EUP) in prod.
        ctx = ctx * pl.reciprocal(denom, approx=False)

        out2 = out2 + jnp.dot(ctx.reshape(B * T, vdim),
                              wp_ref[h * vdim:(h + 1) * vdim, :],
                              preferred_element_type=jnp.float32)   # (B*T, E)

    o_ref[...] = (out2 + bp_ref[...]).astype(o_ref.dtype)


# ---------------------------------------------------------------------------
# Wrapper
# ---------------------------------------------------------------------------

def prepare_kernel_params(params, num_heads, kdim):
    """One-time transform: fold 1/sqrt(kd) into the q columns of c_attn."""
    scale = kdim ** (-0.5)
    nq = num_heads * kdim
    w, b = params["w_attn"], params["b_attn"]
    return {
        "w_attn": jnp.concatenate([w[:, :nq] * scale, w[:, nq:]], axis=-1),
        "b_attn": jnp.concatenate([b[:nq] * scale, b[nq:]], axis=-1),
        "w_proj": params["w_proj"],
        "b_proj": params["b_proj"],
    }


def multihead_attention_forward(x, kernel_params, num_heads, kdim, vdim):
    """x: (B, T, E) float32 -> (B, T, E) float32 (params from prepare_kernel_params)."""
    B, T, E = x.shape
    attn_out_dim = 2 * num_heads * kdim + num_heads * vdim

    kernel = functools.partial(
        _fused_mha_kernel,
        batch=B, seq=T, num_heads=num_heads, kdim=kdim, vdim=vdim)

    vmem = lambda: pl.BlockSpec(memory_space=pltpu.MemorySpace.VMEM)
    out2 = pl.pallas_call(
        kernel,
        out_shape=jax.ShapeDtypeStruct((B * T, E), jnp.float32),
        in_specs=[vmem() for _ in range(5)],
        out_specs=vmem(),
    )(
        x.reshape(B * T, E),                              # free, contiguous reshape
        kernel_params["w_attn"],
        kernel_params["b_attn"].reshape(1, attn_out_dim),
        kernel_params["w_proj"],
        kernel_params["b_proj"].reshape(1, E),
    )
    return out2.reshape(B, T, E)


# ---------------------------------------------------------------------------
# Pure-JAX reference (mirrors the PyTorch masked-softmax path, original params)
# ---------------------------------------------------------------------------

def reference_forward(x, params, num_heads, kdim, vdim):
    B, T, E = x.shape
    qkv = x @ params["w_attn"] + params["b_attn"]
    q, k, v = jnp.split(qkv, [kdim * num_heads, 2 * kdim * num_heads], axis=-1)
    q = q.reshape(B, T, num_heads, kdim)
    k = k.reshape(B, T, num_heads, kdim)
    v = v.reshape(B, T, num_heads, vdim)
    s = jnp.einsum("bthk,bihk->bhti", q, k) * kdim ** (-0.5)
    mask = jnp.tril(jnp.ones((T, T), dtype=bool))
    s = jnp.where(mask, s, -jnp.inf)
    p = jax.nn.softmax(s, axis=-1)
    c = jnp.einsum("bhti,bihv->bthv", p, v).reshape(B, T, num_heads * vdim)
    return c @ params["w_proj"] + params["b_proj"]


# ---------------------------------------------------------------------------
# Main
# ---------------------------------------------------------------------------

if __name__ == "__main__":
    # Small, module-consistent shapes.
    B, T, E, H = 2, 8, 32, 4
    kdim = E // H          # 8
    vdim = E // H          # 8

    key = jax.random.PRNGKey(0)
    kx, kw1, kw2 = jax.random.split(key, 3)

    attn_out_dim = kdim * H * 2 + vdim * H   # 96
    params = {
        "w_attn": 0.02 * jax.random.normal(kw1, (E, attn_out_dim), jnp.float32),
        "b_attn": jnp.zeros((attn_out_dim,), jnp.float32),
        "w_proj": 0.02 * jax.random.normal(kw2, (vdim * H, E), jnp.float32),
        "b_proj": jnp.zeros((E,), jnp.float32),
    }
    # One-time parameter preparation (scale folding); not a per-call op.
    kparams = prepare_kernel_params(params, H, kdim)

    x = jax.random.normal(kx, (B, T, E), jnp.float32)

    out = multihead_attention_forward(x, kparams, H, kdim, vdim)
    out = jax.block_until_ready(out)

    ref = reference_forward(x, params, H, kdim, vdim)
    assert out.shape == (B, T, E)
    assert jnp.allclose(out, ref, atol=1e-5, rtol=1e-5), "mismatch vs reference"

    print("KERNEL_OK")
</pallas_src>

<mosaic_0001>
module attributes {stable_mosaic.version = 11 : i64} {
  func.func @_fused_mha_kernel(%arg0: memref<16x32xf32, #tpu.memory_space<vmem>>, %arg1: memref<32x96xf32, #tpu.memory_space<vmem>>, %arg2: memref<1x96xf32, #tpu.memory_space<vmem>>, %arg3: memref<32x32xf32, #tpu.memory_space<vmem>>, %arg4: memref<1x32xf32, #tpu.memory_space<vmem>>, %arg5: memref<16x32xf32, #tpu.memory_space<vmem>>) attributes {dimension_semantics = [], scalar_prefetch = 0 : i64, scratch_operands = 0 : i64, tpu.core_type = #tpu.core_type<tc>} {
    %c0 = arith.constant 0 : index
    %c0_0 = arith.constant 0 : index
    %0 = vector.load %arg0[%c0, %c0_0] : memref<16x32xf32, #tpu.memory_space<vmem>>, vector<16x32xf32>
    %c0_1 = arith.constant 0 : index
    %c0_2 = arith.constant 0 : index
    %1 = vector.load %arg1[%c0_1, %c0_2] : memref<32x96xf32, #tpu.memory_space<vmem>>, vector<32x96xf32>
    %cst = arith.constant dense<0.000000e+00> : vector<16x96xf32>
    %2 = tpu.matmul %0, %1, %cst {dimension_numbers = #tpu.dot_dimension_numbers<[1], [0], [0], [1], [0, 0, 1, 1], [], []>} : vector<16x32xf32>, vector<32x96xf32>, vector<16x96xf32> -> vector<16x96xf32>
    %c0_3 = arith.constant 0 : index
    %c0_4 = arith.constant 0 : index
    %3 = vector.load %arg2[%c0_3, %c0_4] : memref<1x96xf32, #tpu.memory_space<vmem>>, vector<1x96xf32>
    %4 = vector.broadcast %3 : vector<1x96xf32> to vector<16x96xf32>
    %5 = arith.addf %2, %4 : vector<16x96xf32>
    %6 = vector.shape_cast %5 : vector<16x96xf32> to vector<2x8x96xf32>
    %7 = tpu.iota {dimensions = array<i32: 0>} : vector<8x8xi32>
    %8 = tpu.iota {dimensions = array<i32: 1>} : vector<8x8xi32>
    %9 = arith.cmpi sle, %8, %7 : vector<8x8xi32>
    %cst_5 = arith.constant 0.000000e+00 : f32
    %cst_6 = arith.constant -1.000000e+30 : f32
    %10 = vector.broadcast %cst_5 : f32 to vector<8x8xf32>
    %11 = vector.broadcast %cst_6 : f32 to vector<8x8xf32>
    %12 = arith.select %9, %10, %11 : vector<8x8xi1>, vector<8x8xf32>
    %cst_7 = arith.constant 0.000000e+00 : f32
    %13 = vector.broadcast %cst_7 : f32 to vector<16x32xf32>
    %14 = vector.extract_strided_slice %6 {offsets = [0, 0, 0], sizes = [2, 8, 8], strides = [1, 1, 1]} : vector<2x8x96xf32> to vector<2x8x8xf32>
    %15 = vector.extract_strided_slice %6 {offsets = [0, 0, 32], sizes = [2, 8, 8], strides = [1, 1, 1]} : vector<2x8x96xf32> to vector<2x8x8xf32>
    %16 = vector.extract_strided_slice %6 {offsets = [0, 0, 64], sizes = [2, 8, 8], strides = [1, 1, 1]} : vector<2x8x96xf32> to vector<2x8x8xf32>
    "tpu.trace_start"() <{level = 10 : i32, message = "btk,bik->bti"}> : () -> ()
    %cst_8 = arith.constant dense<0.000000e+00> : vector<2x8x8xf32>
    %17 = tpu.matmul %14, %15, %cst_8 {dimension_numbers = #tpu.dot_dimension_numbers<[2], [2], [1], [1], [0, 0, 0, 1, 1, 1], [0], [0]>} : vector<2x8x8xf32>, vector<2x8x8xf32>, vector<2x8x8xf32> -> vector<2x8x8xf32>
    "tpu.trace_stop"() : () -> ()
    %18 = vector.shape_cast %12 : vector<8x8xf32> to vector<1x8x8xf32>
    %19 = vector.broadcast %18 : vector<1x8x8xf32> to vector<2x8x8xf32>
    %20 = arith.addf %17, %19 : vector<2x8x8xf32>
    %cst_9 = arith.constant dense<0xFF800000> : vector<2x8xf32>
    %21 = vector.multi_reduction <maximumf>, %20, %cst_9 [2] : vector<2x8x8xf32> to vector<2x8xf32>
    %22 = vector.shape_cast %21 : vector<2x8xf32> to vector<2x8x1xf32>
    %23 = vector.broadcast %22 : vector<2x8x1xf32> to vector<2x8x8xf32>
    %24 = arith.subf %20, %23 : vector<2x8x8xf32>
    %25 = math.exp %24 : vector<2x8x8xf32>
    %cst_10 = arith.constant dense<0.000000e+00> : vector<2x8xf32>
    %26 = vector.multi_reduction <add>, %25, %cst_10 [2] : vector<2x8x8xf32> to vector<2x8xf32>
    %27 = vector.shape_cast %26 : vector<2x8xf32> to vector<2x8x1xf32>
    "tpu.trace_start"() <{level = 10 : i32, message = "bti,biv->btv"}> : () -> ()
    %cst_11 = arith.constant dense<0.000000e+00> : vector<2x8x8xf32>
    %28 = tpu.matmul %25, %16, %cst_11 {dimension_numbers = #tpu.dot_dimension_numbers<[2], [1], [1], [2], [0, 0, 0, 1, 1, 2], [0], [0]>} : vector<2x8x8xf32>, vector<2x8x8xf32>, vector<2x8x8xf32> -> vector<2x8x8xf32>
    "tpu.trace_stop"() : () -> ()
    %29 = tpu.reciprocal %27 : vector<2x8x1xf32> -> vector<2x8x1xf32>
    %30 = vector.broadcast %29 : vector<2x8x1xf32> to vector<2x8x8xf32>
    %31 = arith.mulf %28, %30 : vector<2x8x8xf32>
    %32 = vector.shape_cast %31 : vector<2x8x8xf32> to vector<16x8xf32>
    %c0_12 = arith.constant 0 : index
    %c0_13 = arith.constant 0 : index
    %33 = vector.load %arg3[%c0_12, %c0_13] : memref<32x32xf32, #tpu.memory_space<vmem>>, vector<8x32xf32>
    %cst_14 = arith.constant dense<0.000000e+00> : vector<16x32xf32>
    %34 = tpu.matmul %32, %33, %cst_14 {dimension_numbers = #tpu.dot_dimension_numbers<[1], [0], [0], [1], [0, 0, 1, 1], [], []>} : vector<16x8xf32>, vector<8x32xf32>, vector<16x32xf32> -> vector<16x32xf32>
    %35 = arith.addf %13, %34 : vector<16x32xf32>
    %36 = vector.extract_strided_slice %6 {offsets = [0, 0, 8], sizes = [2, 8, 8], strides = [1, 1, 1]} : vector<2x8x96xf32> to vector<2x8x8xf32>
    %37 = vector.extract_strided_slice %6 {offsets = [0, 0, 40], sizes = [2, 8, 8], strides = [1, 1, 1]} : vector<2x8x96xf32> to vector<2x8x8xf32>
    %38 = vector.extract_strided_slice %6 {offsets = [0, 0, 72], sizes = [2, 8, 8], strides = [1, 1, 1]} : vector<2x8x96xf32> to vector<2x8x8xf32>
    "tpu.trace_start"() <{level = 10 : i32, message = "btk,bik->bti"}> : () -> ()
    %cst_15 = arith.constant dense<0.000000e+00> : vector<2x8x8xf32>
    %39 = tpu.matmul %36, %37, %cst_15 {dimension_numbers = #tpu.dot_dimension_numbers<[2], [2], [1], [1], [0, 0, 0, 1, 1, 1], [0], [0]>} : vector<2x8x8xf32>, vector<2x8x8xf32>, vector<2x8x8xf32> -> vector<2x8x8xf32>
    "tpu.trace_stop"() : () -> ()
    %40 = vector.shape_cast %12 : vector<8x8xf32> to vector<1x8x8xf32>
    %41 = vector.broadcast %40 : vector<1x8x8xf32> to vector<2x8x8xf32>
    %42 = arith.addf %39, %41 : vector<2x8x8xf32>
    %cst_16 = arith.constant dense<0xFF800000> : vector<2x8xf32>
    %43 = vector.multi_reduction <maximumf>, %42, %cst_16 [2] : vector<2x8x8xf32> to vector<2x8xf32>
    %44 = vector.shape_cast %43 : vector<2x8xf32> to vector<2x8x1xf32>
    %45 = vector.broadcast %44 : vector<2x8x1xf32> to vector<2x8x8xf32>
    %46 = arith.subf %42, %45 : vector<2x8x8xf32>
    %47 = math.exp %46 : vector<2x8x8xf32>
    %cst_17 = arith.constant dense<0.000000e+00> : vector<2x8xf32>
    %48 = vector.multi_reduction <add>, %47, %cst_17 [2] : vector<2x8x8xf32> to vector<2x8xf32>
    %49 = vector.shape_cast %48 : vector<2x8xf32> to vector<2x8x1xf32>
    "tpu.trace_start"() <{level = 10 : i32, message = "bti,biv->btv"}> : () -> ()
    %cst_18 = arith.constant dense<0.000000e+00> : vector<2x8x8xf32>
    %50 = tpu.matmul %47, %38, %cst_18 {dimension_numbers = #tpu.dot_dimension_numbers<[2], [1], [1], [2], [0, 0, 0, 1, 1, 2], [0], [0]>} : vector<2x8x8xf32>, vector<2x8x8xf32>, vector<2x8x8xf32> -> vector<2x8x8xf32>
    "tpu.trace_stop"() : () -> ()
    %51 = tpu.reciprocal %49 : vector<2x8x1xf32> -> vector<2x8x1xf32>
    %52 = vector.broadcast %51 : vector<2x8x1xf32> to vector<2x8x8xf32>
    %53 = arith.mulf %50, %52 : vector<2x8x8xf32>
    %54 = vector.shape_cast %53 : vector<2x8x8xf32> to vector<16x8xf32>
    %c8 = arith.constant 8 : index
    %c0_19 = arith.constant 0 : index
    %55 = vector.load %arg3[%c8, %c0_19] : memref<32x32xf32, #tpu.memory_space<vmem>>, vector<8x32xf32>
    %cst_20 = arith.constant dense<0.000000e+00> : vector<16x32xf32>
    %56 = tpu.matmul %54, %55, %cst_20 {dimension_numbers = #tpu.dot_dimension_numbers<[1], [0], [0], [1], [0, 0, 1, 1], [], []>} : vector<16x8xf32>, vector<8x32xf32>, vector<16x32xf32> -> vector<16x32xf32>
    %57 = arith.addf %35, %56 : vector<16x32xf32>
    %58 = vector.extract_strided_slice %6 {offsets = [0, 0, 16], sizes = [2, 8, 8], strides = [1, 1, 1]} : vector<2x8x96xf32> to vector<2x8x8xf32>
    %59 = vector.extract_strided_slice %6 {offsets = [0, 0, 48], sizes = [2, 8, 8], strides = [1, 1, 1]} : vector<2x8x96xf32> to vector<2x8x8xf32>
    %60 = vector.extract_strided_slice %6 {offsets = [0, 0, 80], sizes = [2, 8, 8], strides = [1, 1, 1]} : vector<2x8x96xf32> to vector<2x8x8xf32>
    "tpu.trace_start"() <{level = 10 : i32, message = "btk,bik->bti"}> : () -> ()
    %cst_21 = arith.constant dense<0.000000e+00> : vector<2x8x8xf32>
    %61 = tpu.matmul %58, %59, %cst_21 {dimension_numbers = #tpu.dot_dimension_numbers<[2], [2], [1], [1], [0, 0, 0, 1, 1, 1], [0], [0]>} : vector<2x8x8xf32>, vector<2x8x8xf32>, vector<2x8x8xf32> -> vector<2x8x8xf32>
    "tpu.trace_stop"() : () -> ()
    %62 = vector.shape_cast %12 : vector<8x8xf32> to vector<1x8x8xf32>
    %63 = vector.broadcast %62 : vector<1x8x8xf32> to vector<2x8x8xf32>
    %64 = arith.addf %61, %63 : vector<2x8x8xf32>
    %cst_22 = arith.constant dense<0xFF800000> : vector<2x8xf32>
    %65 = vector.multi_reduction <maximumf>, %64, %cst_22 [2] : vector<2x8x8xf32> to vector<2x8xf32>
    %66 = vector.shape_cast %65 : vector<2x8xf32> to vector<2x8x1xf32>
    %67 = vector.broadcast %66 : vector<2x8x1xf32> to vector<2x8x8xf32>
    %68 = arith.subf %64, %67 : vector<2x8x8xf32>
    %69 = math.exp %68 : vector<2x8x8xf32>
    %cst_23 = arith.constant dense<0.000000e+00> : vector<2x8xf32>
    %70 = vector.multi_reduction <add>, %69, %cst_23 [2] : vector<2x8x8xf32> to vector<2x8xf32>
    %71 = vector.shape_cast %70 : vector<2x8xf32> to vector<2x8x1xf32>
    "tpu.trace_start"() <{level = 10 : i32, message = "bti,biv->btv"}> : () -> ()
    %cst_24 = arith.constant dense<0.000000e+00> : vector<2x8x8xf32>
    %72 = tpu.matmul %69, %60, %cst_24 {dimension_numbers = #tpu.dot_dimension_numbers<[2], [1], [1], [2], [0, 0, 0, 1, 1, 2], [0], [0]>} : vector<2x8x8xf32>, vector<2x8x8xf32>, vector<2x8x8xf32> -> vector<2x8x8xf32>
    "tpu.trace_stop"() : () -> ()
    %73 = tpu.reciprocal %71 : vector<2x8x1xf32> -> vector<2x8x1xf32>
    %74 = vector.broadcast %73 : vector<2x8x1xf32> to vector<2x8x8xf32>
    %75 = arith.mulf %72, %74 : vector<2x8x8xf32>
    %76 = vector.shape_cast %75 : vector<2x8x8xf32> to vector<16x8xf32>
    %c16 = arith.constant 16 : index
    %c0_25 = arith.constant 0 : index
    %77 = vector.load %arg3[%c16, %c0_25] : memref<32x32xf32, #tpu.memory_space<vmem>>, vector<8x32xf32>
    %cst_26 = arith.constant dense<0.000000e+00> : vector<16x32xf32>
    %78 = tpu.matmul %76, %77, %cst_26 {dimension_numbers = #tpu.dot_dimension_numbers<[1], [0], [0], [1], [0, 0, 1, 1], [], []>} : vector<16x8xf32>, vector<8x32xf32>, vector<16x32xf32> -> vector<16x32xf32>
    %79 = arith.addf %57, %78 : vector<16x32xf32>
    %80 = vector.extract_strided_slice %6 {offsets = [0, 0, 24], sizes = [2, 8, 8], strides = [1, 1, 1]} : vector<2x8x96xf32> to vector<2x8x8xf32>
    %81 = vector.extract_strided_slice %6 {offsets = [0, 0, 56], sizes = [2, 8, 8], strides = [1, 1, 1]} : vector<2x8x96xf32> to vector<2x8x8xf32>
    %82 = vector.extract_strided_slice %6 {offsets = [0, 0, 88], sizes = [2, 8, 8], strides = [1, 1, 1]} : vector<2x8x96xf32> to vector<2x8x8xf32>
    "tpu.trace_start"() <{level = 10 : i32, message = "btk,bik->bti"}> : () -> ()
    %cst_27 = arith.constant dense<0.000000e+00> : vector<2x8x8xf32>
    %83 = tpu.matmul %80, %81, %cst_27 {dimension_numbers = #tpu.dot_dimension_numbers<[2], [2], [1], [1], [0, 0, 0, 1, 1, 1], [0], [0]>} : vector<2x8x8xf32>, vector<2x8x8xf32>, vector<2x8x8xf32> -> vector<2x8x8xf32>
    "tpu.trace_stop"() : () -> ()
    %84 = vector.shape_cast %12 : vector<8x8xf32> to vector<1x8x8xf32>
    %85 = vector.broadcast %84 : vector<1x8x8xf32> to vector<2x8x8xf32>
    %86 = arith.addf %83, %85 : vector<2x8x8xf32>
    %cst_28 = arith.constant dense<0xFF800000> : vector<2x8xf32>
    %87 = vector.multi_reduction <maximumf>, %86, %cst_28 [2] : vector<2x8x8xf32> to vector<2x8xf32>
    %88 = vector.shape_cast %87 : vector<2x8xf32> to vector<2x8x1xf32>
    %89 = vector.broadcast %88 : vector<2x8x1xf32> to vector<2x8x8xf32>
    %90 = arith.subf %86, %89 : vector<2x8x8xf32>
    %91 = math.exp %90 : vector<2x8x8xf32>
    %cst_29 = arith.constant dense<0.000000e+00> : vector<2x8xf32>
    %92 = vector.multi_reduction <add>, %91, %cst_29 [2] : vector<2x8x8xf32> to vector<2x8xf32>
    %93 = vector.shape_cast %92 : vector<2x8xf32> to vector<2x8x1xf32>
    "tpu.trace_start"() <{level = 10 : i32, message = "bti,biv->btv"}> : () -> ()
    %cst_30 = arith.constant dense<0.000000e+00> : vector<2x8x8xf32>
    %94 = tpu.matmul %91, %82, %cst_30 {dimension_numbers = #tpu.dot_dimension_numbers<[2], [1], [1], [2], [0, 0, 0, 1, 1, 2], [0], [0]>} : vector<2x8x8xf32>, vector<2x8x8xf32>, vector<2x8x8xf32> -> vector<2x8x8xf32>
    "tpu.trace_stop"() : () -> ()
    %95 = tpu.reciprocal %93 : vector<2x8x1xf32> -> vector<2x8x1xf32>
    %96 = vector.broadcast %95 : vector<2x8x1xf32> to vector<2x8x8xf32>
    %97 = arith.mulf %94, %96 : vector<2x8x8xf32>
    %98 = vector.shape_cast %97 : vector<2x8x8xf32> to vector<16x8xf32>
    %c24 = arith.constant 24 : index
    %c0_31 = arith.constant 0 : index
    %99 = vector.load %arg3[%c24, %c0_31] : memref<32x32xf32, #tpu.memory_space<vmem>>, vector<8x32xf32>
    %cst_32 = arith.constant dense<0.000000e+00> : vector<16x32xf32>
    %100 = tpu.matmul %98, %99, %cst_32 {dimension_numbers = #tpu.dot_dimension_numbers<[1], [0], [0], [1], [0, 0, 1, 1], [], []>} : vector<16x8xf32>, vector<8x32xf32>, vector<16x32xf32> -> vector<16x32xf32>
    %101 = arith.addf %79, %100 : vector<16x32xf32>
    %c0_33 = arith.constant 0 : index
    %c0_34 = arith.constant 0 : index
    %102 = vector.load %arg4[%c0_33, %c0_34] : memref<1x32xf32, #tpu.memory_space<vmem>>, vector<1x32xf32>
    %103 = vector.broadcast %102 : vector<1x32xf32> to vector<16x32xf32>
    %104 = arith.addf %101, %103 : vector<16x32xf32>
    %c0_35 = arith.constant 0 : index
    %c0_36 = arith.constant 0 : index
    %105 = vector.load %arg5[%c0_35, %c0_36] : memref<16x32xf32, #tpu.memory_space<vmem>>, vector<16x32xf32>
    tpu.vector_store %arg5[%c0_35, %c0_36], %104 {strides = array<i32>} : memref<16x32xf32, #tpu.memory_space<vmem>>, vector<16x32xf32>,
    return
  }
}

</mosaic_0001>

<llo_original>
// kernel: tpu_custom_call.1
$region0: #{tpu_custom_call.1}
  #allocation0 [shape = 'u32[]', space=smem, size = 0x4, offset = 0x4, fixed_abs, tag = 'smem constant byte address 0x4 - core index']
  #allocation1 [shape = 'u32[144,128]{1,0:T(1,128)}', space=vmem, size = 0x12000, scoped, tag = 'internal scratch']
  %s0 = inlined_call_operand.hbm [shape: f32[16,32], index: 0, kind: input, shape index: {}]
  %s1 = inlined_call_operand.hbm [shape: f32[32,96], index: 1, kind: input, shape index: {}]
  %s2 = inlined_call_operand.vmem [shape: f32[1,96], index: 2, kind: input, shape index: {}]
  %s3 = inlined_call_operand.hbm [shape: f32[32,32], index: 3, kind: input, shape index: {}]
  %s4 = inlined_call_operand.vmem [shape: f32[1,32], index: 4, kind: input, shape index: {}]
  %s5 = inlined_call_operand.hbm [shape: f32[16,32], index: 5, kind: output, shape index: {}]
  %s6 = sld [smem:[#allocation0]]
  $region42: #{tpu_custom_call.1} parent=0
    _
  %s8 = ssub.s32 1, %s6
  %s9 = scalar_select 0, %s8, %s6
  $region1: #{tpu_custom_call.1} parent=0
    #allocation2 [shape = 'u8[8192]{0}', space=vmem, size = 0x2000, scoped, tag = 'input window, operand 0, single buffered']
    #allocation3 [shape = 's32[1]{0}', space=sflag, size = 0x4, scoped, tag = 'scoped memory for tpu_custom_call.1']
    #allocation4 [shape = 's32[1]{0}', space=sflag, size = 0x4, scoped, tag = 'scoped memory for tpu_custom_call.1']
    #allocation5 [shape = 'u8[16384]{0}', space=vmem, size = 0x4000, scoped, tag = 'input window, operand 1, single buffered']
    #allocation6 [shape = 's32[1]{0}', space=sflag, size = 0x4, scoped, tag = 'scoped memory for tpu_custom_call.1']
    #allocation7 [shape = 'u8[16384]{0}', space=vmem, size = 0x4000, scoped, tag = 'input window, operand 3, single buffered']
    #allocation8 [shape = 'u8[8192]{0}', space=vmem, size = 0x2000, scoped, tag = 'output window, operand 0, single buffered']
    %10 = vsyncpa [#allocation3], 0
    %11 = vsyncpa [#allocation6], 0
    %12 = vsyncpa [#allocation4], 0
    // Predicated region
    $region2: #{tpu_custom_call.1} parent=1 // pred_check
      _
    $region3: #{tpu_custom_call.1} parent=1 // pred_check_branch
      %14 = sbr.rel (0) target = $region5
    $region4: #{tpu_custom_call.1} parent=1 // pred_region
      %s16 = ssub.s32 256, 256
      %17 = vsyncadd [#allocation3], %s16
      %s18 = sshll.u32 [#allocation2], 4
      %s19 = int_to_ptr.vmem [resolvable:$true] %s18
      %24 = dma.hbm_to_vmem [thread:$0]  %s0, 256, %s19, [#allocation3], 128, 128, 8
    $region5: #{tpu_custom_call.1} parent=1 // pred_fallthru
      _
    // Predicated region
    $region6: #{tpu_custom_call.1} parent=1 // pred_check
      _
    $region7: #{tpu_custom_call.1} parent=1 // pred_check_branch
      %26 = sbr.rel (0) target = $region9
    $region8: #{tpu_custom_call.1} parent=1 // pred_region
      %s28 = ssub.s32 512, 512
      %29 = vsyncadd [#allocation6], %s28
      %s30 = sshll.u32 [#allocation5], 4
      %s31 = int_to_ptr.vmem [resolvable:$true] %s30
      %36 = dma.hbm_to_vmem [thread:$0]  %s1, 512, %s31, [#allocation6], 128, 128, 8
    $region9: #{tpu_custom_call.1} parent=1 // pred_fallthru
      _
    // Predicated region
    $region10: #{tpu_custom_call.1} parent=1 // pred_check
      _
    $region11: #{tpu_custom_call.1} parent=1 // pred_check_branch
      %38 = sbr.rel (0) target = $region13
    $region12: #{tpu_custom_call.1} parent=1 // pred_region
      _
    $region13: #{tpu_custom_call.1} parent=1 // pred_fallthru
      _
    // Predicated region
    $region14: #{tpu_custom_call.1} parent=1 // pred_check
      _
    $region15: #{tpu_custom_call.1} parent=1 // pred_check_branch
      %40 = sbr.rel (0) target = $region17
    $region16: #{tpu_custom_call.1} parent=1 // pred_region
      %s42 = ssub.s32 512, 512
      %43 = vsyncadd [#allocation6], %s42
      %s44 = sshll.u32 [#allocation7], 4
      %s45 = int_to_ptr.vmem [resolvable:$true] %s44
      %50 = dma.hbm_to_vmem [thread:$0]  %s3, 512, %s45, [#allocation6], 128, 128, 8
    $region17: #{tpu_custom_call.1} parent=1 // pred_fallthru
      _
    // Predicated region
    $region18: #{tpu_custom_call.1} parent=1 // pred_check
      _
    $region19: #{tpu_custom_call.1} parent=1 // pred_check_branch
      %52 = sbr.rel (0) target = $region21
    $region20: #{tpu_custom_call.1} parent=1 // pred_region
      _
    $region21: #{tpu_custom_call.1} parent=1 // pred_fallthru
      _
    // Predicated region
    $region22: #{tpu_custom_call.1} parent=1 // pred_check
      _
    $region23: #{tpu_custom_call.1} parent=1 // pred_check_branch
      %54 = sbr.rel (0) target = $region25
    $region24: #{tpu_custom_call.1} parent=1 // pred_region
      %55 = dma.done [#allocation3], 256
    $region25: #{tpu_custom_call.1} parent=1 // pred_fallthru
      _
    // Predicated region
    $region26: #{tpu_custom_call.1} parent=1 // pred_check
      _
    $region27: #{tpu_custom_call.1} parent=1 // pred_check_branch
      %57 = sbr.rel (0) target = $region29
    $region28: #{tpu_custom_call.1} parent=1 // pred_region
      %58 = dma.done [#allocation6], 512
    $region29: #{tpu_custom_call.1} parent=1 // pred_fallthru
      _
    // Predicated region
    $region30: #{tpu_custom_call.1} parent=1 // pred_check
      _
    $region31: #{tpu_custom_call.1} parent=1 // pred_check_branch
      %60 = sbr.rel (0) target = $region33
    $region32: #{tpu_custom_call.1} parent=1 // pred_region
      %61 = dma.done [#allocation6], 512
    $region33: #{tpu_custom_call.1} parent=1 // pred_fallthru
      _
    %v62 = vld [vmem:[#allocation2] sm:$0xff]
    %v63 = vld [vmem:[#allocation2 + $0x8] sm:$0xff]
    %v64 = vld [vmem:[#allocation5] sm:$0xff]
    %v65 = vld [vmem:[#allocation5 + $0x8] sm:$0xff]
    %v66 = vld [vmem:[#allocation5 + $0x10] sm:$0xff]
    %v67 = vld [vmem:[#allocation5 + $0x18] sm:$0xff]
    %v68 = vld [vmem:[%s2] sm:$0x1]
    %v70 = vlaneseq
    %v71 = vshrl.u32 %v70, 7
    %v72 = vsub.s32 0, %v71
    %v73 = vrot.slane %v68, %v72
    %vm75 = vcmask 261120
    %v77 = vsel %vm75, %v62, 0
    %v80 = vsel %vm75, %v63, 0
    %82 = vmatprep.subr.mxu0 0.0
    %83 = vmatpush1.msra.mxu0 0.0
    %84 = vmatprep.subr.mxu0 0.0
    %85 = vmatpush1.msra.mxu0 0.0
    %86 = vmatprep.subr.mxu0 0.0
    %87 = vmatpush1.msra.mxu0 0.0
    %88 = vmatprep.subr.mxu0 0.0
    %89 = vmatpush1.msra.mxu0 0.0
    %90 = vmatprep.subr.mxu0 0.0
    %91 = vmatpush1.msra.mxu0 0.0
    %92 = vmatprep.subr.mxu0 0.0
    %93 = vmatpush1.msra.mxu0 0.0
    %94 = vmatprep.subr.mxu0 0.0
    %95 = vmatpush1.msra.mxu0 0.0
    %96 = vmatprep.subr.mxu0 0.0
    %97 = vmatpush1.msra.mxu0 0.0
    %98 = vmatprep.subr.mxu0 0.0
    %99 = vmatpush1.msra.mxu0 0.0
    %100 = vmatprep.subr.mxu0 0.0
    %101 = vmatpush1.msra.mxu0 0.0
    %102 = vmatprep.subr.mxu0 0.0
    %103 = vmatpush1.msra.mxu0 0.0
    %104 = vmatprep.subr.mxu0 0.0
    %105 = vmatpush1.msra.mxu0 0.0
    %106 = vmatprep.subr.mxu0 0.0
    %107 = vmatpush1.msra.mxu0 %v67
    %108 = vmatprep.subr.mxu0 0.0
    %109 = vmatpush1.msra.mxu0 %v66
    %110 = vmatprep.subr.mxu0 0.0
    %111 = vmatpush1.msra.mxu0 %v65
    %112 = vmatprep.subr.mxu0 0.0
    %113 = vmatpush1.msra.mxu0 %v64
    %114 = vmatprep.subr.mxu0 0.0
    %115 = vmatpush2.msra.mxu0 0.0
    %116 = vmatprep.subr.mxu0 0.0
    %117 = vmatpush2.msra.mxu0 0.0
    %118 = vmatprep.subr.mxu0 0.0
    %119 = vmatpush2.msra.mxu0 0.0
    %120 = vmatprep.subr.mxu0 0.0
    %121 = vmatpush2.msra.mxu0 0.0
    %122 = vmatprep.subr.mxu0 0.0
    %123 = vmatpush2.msra.mxu0 0.0
    %124 = vmatprep.subr.mxu0 0.0
    %125 = vmatpush2.msra.mxu0 0.0
    %126 = vmatprep.subr.mxu0 0.0
    %127 = vmatpush2.msra.mxu0 0.0
    %128 = vmatprep.subr.mxu0 0.0
    %129 = vmatpush2.msra.mxu0 0.0
    %130 = vmatprep.subr.mxu0 0.0
    %131 = vmatpush2.msra.mxu0 0.0
    %132 = vmatprep.subr.mxu0 0.0
    %133 = vmatpush2.msra.mxu0 0.0
    %134 = vmatprep.subr.mxu0 0.0
    %135 = vmatpush2.msra.mxu0 0.0
    %136 = vmatprep.subr.mxu0 0.0
    %137 = vmatpush2.msra.mxu0 0.0
    %138 = vmatprep.subr.mxu0 0.0
    %139 = vmatpush2.msra.mxu0 0.0
    %140 = vmatprep.subr.mxu0 0.0
    %141 = vmatpush2.msra.mxu0 0.0
    %142 = vmatprep.subr.mxu0 0.0
    %143 = vmatpush2.msra.mxu0 0.0
    %144 = vmatprep.subr.mxu0 0.0
    %145 = vmatpush2.msra.mxu0 0.0
    %146 = vmatprep.mubr.f32.mxu0 0.0
    %147 = vmatmul.mubr.f32.gmra.mxu0 %v77
    %v148 = vpop.f32.mrf.mxu0
    %v149 = vadd.f32 %v73, %v148
    %v150 = vpop.f32.mrf.mxu0
    %151 = vmatprep.mubr.f32.mxu0 0.0
    %152 = vmatmul.mubr.f32.gmra.mxu0 %v80
    %v153 = vpop.f32.mrf.mxu0
    %v154 = vadd.f32 %v73, %v153
    %v155 = vpop.f32.mrf.mxu0
    %156 = vdwg.mxu0
    %v157 = vlaneseq
    %v158 = vshrl.u32 %v157, 7
    %v159 = vlaneseq
    %v160 = vand.u32 %v159, 127
    %vm161 = vcmp.le.s32.totalorder %v160, %v158
    %v162 = vsel %vm161, 0.0, -1e+30
    %164 = vrot.lane.b32.xlu0 %v149, 96
    %v165 = vpop.permute.xlu0 %164
    %vm166 = vcmask 64512
    %v167 = vsel %vm166, %v149, 0
    %v169 = vsel %vm166, %v165, 0
    %171 = vmatprep.subr.mxu0 0.0
    %172 = vmatpush1.xpose.msra.mxu0 0.0
    %173 = vmatprep.subr.mxu0 0.0
    %174 = vmatpush1.xpose.msra.mxu0 0.0
    %175 = vmatprep.subr.mxu0 0.0
    %176 = vmatpush1.xpose.msra.mxu0 0.0
    %177 = vmatprep.subr.mxu0 0.0
    %178 = vmatpush1.xpose.msra.mxu0 0.0
    %179 = vmatprep.subr.mxu0 0.0
    %180 = vmatpush1.xpose.msra.mxu0 0.0
    %181 = vmatprep.subr.mxu0 0.0
    %182 = vmatpush1.xpose.msra.mxu0 0.0
    %183 = vmatprep.subr.mxu0 0.0
    %184 = vmatpush1.xpose.msra.mxu0 0.0
    %185 = vmatprep.subr.mxu0 0.0
    %186 = vmatpush1.xpose.msra.mxu0 0.0
    %187 = vmatprep.subr.mxu0 0.0
    %188 = vmatpush1.xpose.msra.mxu0 0.0
    %189 = vmatprep.subr.mxu0 0.0
    %190 = vmatpush1.xpose.msra.mxu0 0.0
    %191 = vmatprep.subr.mxu0 0.0
    %192 = vmatpush1.xpose.msra.mxu0 0.0
    %193 = vmatprep.subr.mxu0 0.0
    %194 = vmatpush1.xpose.msra.mxu0 0.0
    %195 = vmatprep.subr.mxu0 0.0
    %196 = vmatpush1.xpose.msra.mxu0 0.0
    %197 = vmatprep.subr.mxu0 0.0
    %198 = vmatpush1.xpose.msra.mxu0 0.0
    %199 = vmatprep.subr.mxu0 0.0
    %200 = vmatpush1.xpose.msra.mxu0 0.0
    %201 = vmatprep.subr.mxu0 0.0
    %202 = vmatpush1.xpose.msra.mxu0 %v169
    %203 = vmatprep.subr.mxu0 0.0
    %204 = vmatpush2.xpose.msra.mxu0 0.0
    %205 = vmatprep.subr.mxu0 0.0
    %206 = vmatpush2.xpose.msra.mxu0 0.0
    %207 = vmatprep.subr.mxu0 0.0
    %208 = vmatpush2.xpose.msra.mxu0 0.0
    %209 = vmatprep.subr.mxu0 0.0
    %210 = vmatpush2.xpose.msra.mxu0 0.0
    %211 = vmatprep.subr.mxu0 0.0
    %212 = vmatpush2.xpose.msra.mxu0 0.0
    %213 = vmatprep.subr.mxu0 0.0
    %214 = vmatpush2.xpose.msra.mxu0 0.0
    %215 = vmatprep.subr.mxu0 0.0
    %216 = vmatpush2.xpose.msra.mxu0 0.0
    %217 = vmatprep.subr.mxu0 0.0
    %218 = vmatpush2.xpose.msra.mxu0 0.0
    %219 = vmatprep.subr.mxu0 0.0
    %220 = vmatpush2.xpose.msra.mxu0 0.0
    %221 = vmatprep.subr.mxu0 0.0
    %222 = vmatpush2.xpose.msra.mxu0 0.0
    %223 = vmatprep.subr.mxu0 0.0
    %224 = vmatpush2.xpose.msra.mxu0 0.0
    %225 = vmatprep.subr.mxu0 0.0
    %226 = vmatpush2.xpose.msra.mxu0 0.0
    %227 = vmatprep.subr.mxu0 0.0
    %228 = vmatpush2.xpose.msra.mxu0 0.0
    %229 = vmatprep.subr.mxu0 0.0
    %230 = vmatpush2.xpose.msra.mxu0 0.0
    %231 = vmatprep.subr.mxu0 0.0
    %232 = vmatpush2.xpose.msra.mxu0 0.0
    %233 = vmatprep.subr.mxu0 0.0
    %234 = vmatpush2.xpose.msra.mxu0 0.0
    %235 = vmatprep.mubr.f32.mxu0 0.0
    %236 = vmatmul.mubr.f32.gmra.mxu0 %v167
    %v237 = vpop.f32.mrf.mxu0
    %v238 = vadd.f32 %v162, %v237
    %v239 = vpop.f32.mrf.mxu0
    %240 = vdwg.mxu0
    %242 = vrot.lane.b32.xlu0 %v154, 96
    %v243 = vpop.permute.xlu0 %242
    %v244 = vsel %vm166, %v154, 0
    %v246 = vsel %vm166, %v243, 0
    %248 = vmatprep.subr.mxu0 0.0
    %249 = vmatpush1.xpose.msra.mxu0 0.0
    %250 = vmatprep.subr.mxu0 0.0
    %251 = vmatpush1.xpose.msra.mxu0 0.0
    %252 = vmatprep.subr.mxu0 0.0
    %253 = vmatpush1.xpose.msra.mxu0 0.0
    %254 = vmatprep.subr.mxu0 0.0
    %255 = vmatpush1.xpose.msra.mxu0 0.0
    %256 = vmatprep.subr.mxu0 0.0
    %257 = vmatpush1.xpose.msra.mxu0 0.0
    %258 = vmatprep.subr.mxu0 0.0
    %259 = vmatpush1.xpose.msra.mxu0 0.0
    %260 = vmatprep.subr.mxu0 0.0
    %261 = vmatpush1.xpose.msra.mxu0 0.0
    %262 = vmatprep.subr.mxu0 0.0
    %263 = vmatpush1.xpose.msra.mxu0 0.0
    %264 = vmatprep.subr.mxu0 0.0
    %265 = vmatpush1.xpose.msra.mxu0 0.0
    %266 = vmatprep.subr.mxu0 0.0
    %267 = vmatpush1.xpose.msra.mxu0 0.0
    %268 = vmatprep.subr.mxu0 0.0
    %269 = vmatpush1.xpose.msra.mxu0 0.0
    %270 = vmatprep.subr.mxu0 0.0
    %271 = vmatpush1.xpose.msra.mxu0 0.0
    %272 = vmatprep.subr.mxu0 0.0
    %273 = vmatpush1.xpose.msra.mxu0 0.0
    %274 = vmatprep.subr.mxu0 0.0
    %275 = vmatpush1.xpose.msra.mxu0 0.0
    %276 = vmatprep.subr.mxu0 0.0
    %277 = vmatpush1.xpose.msra.mxu0 0.0
    %278 = vmatprep.subr.mxu0 0.0
    %279 = vmatpush1.xpose.msra.mxu0 %v246
    %280 = vmatprep.subr.mxu0 0.0
    %281 = vmatpush2.xpose.msra.mxu0 0.0
    %282 = vmatprep.subr.mxu0 0.0
    %283 = vmatpush2.xpose.msra.mxu0 0.0
    %284 = vmatprep.subr.mxu0 0.0
    %285 = vmatpush2.xpose.msra.mxu0 0.0
    %286 = vmatprep.subr.mxu0 0.0
    %287 = vmatpush2.xpose.msra.mxu0 0.0
    %288 = vmatprep.subr.mxu0 0.0
    %289 = vmatpush2.xpose.msra.mxu0 0.0
    %290 = vmatprep.subr.mxu0 0.0
    %291 = vmatpush2.xpose.msra.mxu0 0.0
    %292 = vmatprep.subr.mxu0 0.0
    %293 = vmatpush2.xpose.msra.mxu0 0.0
    %294 = vmatprep.subr.mxu0 0.0
    %295 = vmatpush2.xpose.msra.mxu0 0.0
    %296 = vmatprep.subr.mxu0 0.0
    %297 = vmatpush2.xpose.msra.mxu0 0.0
    %298 = vmatprep.subr.mxu0 0.0
    %299 = vmatpush2.xpose.msra.mxu0 0.0
    %300 = vmatprep.subr.mxu0 0.0
    %301 = vmatpush2.xpose.msra.mxu0 0.0
    %302 = vmatprep.subr.mxu0 0.0
    %303 = vmatpush2.xpose.msra.mxu0 0.0
    %304 = vmatprep.subr.mxu0 0.0
    %305 = vmatpush2.xpose.msra.mxu0 0.0
    %306 = vmatprep.subr.mxu0 0.0
    %307 = vmatpush2.xpose.msra.mxu0 0.0
    %308 = vmatprep.subr.mxu0 0.0
    %309 = vmatpush2.xpose.msra.mxu0 0.0
    %310 = vmatprep.subr.mxu0 0.0
    %311 = vmatpush2.xpose.msra.mxu0 0.0
    %312 = vmatprep.mubr.f32.mxu0 0.0
    %313 = vmatmul.mubr.f32.gmra.mxu0 %v244
    %v314 = vpop.f32.mrf.mxu0
    %v315 = vadd.f32 %v162, %v314
    %v316 = vpop.f32.mrf.mxu0
    %317 = vdwg.mxu0
    %v318 = vsel %vm166, %v238, -inf
    %319 = vmax.xlane.f32.xlu0 %v318
    %v320 = vpop.xlane.xlu0 %319
    %v321 = vsel %vm166, %v315, -inf
    %322 = vmax.xlane.f32.xlu0 %v321
    %v323 = vpop.xlane.xlu0 %322
    %v324 = vsub.f32 %v238, %v320
    %v325 = vsub.f32 %v315, %v323
    %v326 = vmul.f32 %v324, 1.442695
    %v327 = vpow.pop %v326
    %v328 = vmul.f32 %v325, 1.442695
    %v329 = vpow.pop %v328
    %v330 = vsel %vm166, %v327, 0.0
    %331 = vadd.xlane.f32.xlu0 %v330
    %v332 = vpop.xlane.xlu0 %331
    %v333 = vsel %vm166, %v329, 0.0
    %334 = vadd.xlane.f32.xlu0 %v333
    %v335 = vpop.xlane.xlu0 %334
    %336 = vrot.lane.b32.xlu0 %v149, 64
    %v337 = vpop.permute.xlu0 %336
    %v340 = vsel %vm166, %v327, 0
    %342 = vmatprep.subr.mxu0 0.0
    %343 = vmatpush1.msra.mxu0 0.0
    %344 = vmatprep.subr.mxu0 0.0
    %345 = vmatpush1.msra.mxu0 0.0
    %346 = vmatprep.subr.mxu0 0.0
    %347 = vmatpush1.msra.mxu0 0.0
    %348 = vmatprep.subr.mxu0 0.0
    %349 = vmatpush1.msra.mxu0 0.0
    %350 = vmatprep.subr.mxu0 0.0
    %351 = vmatpush1.msra.mxu0 0.0
    %352 = vmatprep.subr.mxu0 0.0
    %353 = vmatpush1.msra.mxu0 0.0
    %354 = vmatprep.subr.mxu0 0.0
    %355 = vmatpush1.msra.mxu0 0.0
    %356 = vmatprep.subr.mxu0 0.0
    %357 = vmatpush1.msra.mxu0 0.0
    %358 = vmatprep.subr.mxu0 0.0
    %359 = vmatpush1.msra.mxu0 0.0
    %360 = vmatprep.subr.mxu0 0.0
    %361 = vmatpush1.msra.mxu0 0.0
    %362 = vmatprep.subr.mxu0 0.0
    %363 = vmatpush1.msra.mxu0 0.0
    %364 = vmatprep.subr.mxu0 0.0
    %365 = vmatpush1.msra.mxu0 0.0
    %366 = vmatprep.subr.mxu0 0.0
    %367 = vmatpush1.msra.mxu0 0.0
    %368 = vmatprep.subr.mxu0 0.0
    %369 = vmatpush1.msra.mxu0 0.0
    %370 = vmatprep.subr.mxu0 0.0
    %371 = vmatpush1.msra.mxu0 0.0
    %372 = vmatprep.subr.mxu0 0.0
    %373 = vmatpush1.msra.mxu0 %v337
    %374 = vmatprep.subr.mxu0 0.0
    %375 = vmatpush2.msra.mxu0 0.0
    %376 = vmatprep.subr.mxu0 0.0
    %377 = vmatpush2.msra.mxu0 0.0
    %378 = vmatprep.subr.mxu0 0.0
    %379 = vmatpush2.msra.mxu0 0.0
    %380 = vmatprep.subr.mxu0 0.0
    %381 = vmatpush2.msra.mxu0 0.0
    %382 = vmatprep.subr.mxu0 0.0
    %383 = vmatpush2.msra.mxu0 0.0
    %384 = vmatprep.subr.mxu0 0.0
    %385 = vmatpush2.msra.mxu0 0.0
    %386 = vmatprep.subr.mxu0 0.0
    %387 = vmatpush2.msra.mxu0 0.0
    %388 = vmatprep.subr.mxu0 0.0
    %389 = vmatpush2.msra.mxu0 0.0
    %390 = vmatprep.subr.mxu0 0.0
    %391 = vmatpush2.msra.mxu0 0.0
    %392 = vmatprep.subr.mxu0 0.0
    %393 = vmatpush2.msra.mxu0 0.0
    %394 = vmatprep.subr.mxu0 0.0
    %395 = vmatpush2.msra.mxu0 0.0
    %396 = vmatprep.subr.mxu0 0.0
    %397 = vmatpush2.msra.mxu0 0.0
    %398 = vmatprep.subr.mxu0 0.0
    %399 = vmatpush2.msra.mxu0 0.0
    %400 = vmatprep.subr.mxu0 0.0
    %401 = vmatpush2.msra.mxu0 0.0
    %402 = vmatprep.subr.mxu0 0.0
    %403 = vmatpush2.msra.mxu0 0.0
    %404 = vmatprep.subr.mxu0 0.0
    %405 = vmatpush2.msra.mxu0 0.0
    %406 = vmatprep.mubr.f32.mxu0 0.0
    %407 = vmatmul.mubr.f32.gmra.mxu0 %v340
    %v408 = vpop.f32.mrf.mxu0
    %v409 = vadd.f32 0.0, %v408
    %v410 = vpop.f32.mrf.mxu0
    %411 = vdwg.mxu0
    %412 = vrot.lane.b32.xlu0 %v154, 64
    %v413 = vpop.permute.xlu0 %412
    %v416 = vsel %vm166, %v329, 0
    %418 = vmatprep.subr.mxu0 0.0
    %419 = vmatpush1.msra.mxu0 0.0
    %420 = vmatprep.subr.mxu0 0.0
    %421 = vmatpush1.msra.mxu0 0.0
    %422 = vmatprep.subr.mxu0 0.0
    %423 = vmatpush1.msra.mxu0 0.0
    %424 = vmatprep.subr.mxu0 0.0
    %425 = vmatpush1.msra.mxu0 0.0
    %426 = vmatprep.subr.mxu0 0.0
    %427 = vmatpush1.msra.mxu0 0.0
    %428 = vmatprep.subr.mxu0 0.0
    %429 = vmatpush1.msra.mxu0 0.0
    %430 = vmatprep.subr.mxu0 0.0
    %431 = vmatpush1.msra.mxu0 0.0
    %432 = vmatprep.subr.mxu0 0.0
    %433 = vmatpush1.msra.mxu0 0.0
    %434 = vmatprep.subr.mxu0 0.0
    %435 = vmatpush1.msra.mxu0 0.0
    %436 = vmatprep.subr.mxu0 0.0
    %437 = vmatpush1.msra.mxu0 0.0
    %438 = vmatprep.subr.mxu0 0.0
    %439 = vmatpush1.msra.mxu0 0.0
    %440 = vmatprep.subr.mxu0 0.0
    %441 = vmatpush1.msra.mxu0 0.0
    %442 = vmatprep.subr.mxu0 0.0
    %443 = vmatpush1.msra.mxu0 0.0
    %444 = vmatprep.subr.mxu0 0.0
    %445 = vmatpush1.msra.mxu0 0.0
    %446 = vmatprep.subr.mxu0 0.0
    %447 = vmatpush1.msra.mxu0 0.0
    %448 = vmatprep.subr.mxu0 0.0
    %449 = vmatpush1.msra.mxu0 %v413
    %450 = vmatprep.subr.mxu0 0.0
    %451 = vmatpush2.msra.mxu0 0.0
    %452 = vmatprep.subr.mxu0 0.0
    %453 = vmatpush2.msra.mxu0 0.0
    %454 = vmatprep.subr.mxu0 0.0
    %455 = vmatpush2.msra.mxu0 0.0
    %456 = vmatprep.subr.mxu0 0.0
    %457 = vmatpush2.msra.mxu0 0.0
    %458 = vmatprep.subr.mxu0 0.0
    %459 = vmatpush2.msra.mxu0 0.0
    %460 = vmatprep.subr.mxu0 0.0
    %461 = vmatpush2.msra.mxu0 0.0
    %462 = vmatprep.subr.mxu0 0.0
    %463 = vmatpush2.msra.mxu0 0.0
    %464 = vmatprep.subr.mxu0 0.0
    %465 = vmatpush2.msra.mxu0 0.0
    %466 = vmatprep.subr.mxu0 0.0
    %467 = vmatpush2.msra.mxu0 0.0
    %468 = vmatprep.subr.mxu0 0.0
    %469 = vmatpush2.msra.mxu0 0.0
    %470 = vmatprep.subr.mxu0 0.0
    %471 = vmatpush2.msra.mxu0 0.0
    %472 = vmatprep.subr.mxu0 0.0
    %473 = vmatpush2.msra.mxu0 0.0
    %474 = vmatprep.subr.mxu0 0.0
    %475 = vmatpush2.msra.mxu0 0.0
    %476 = vmatprep.subr.mxu0 0.0
    %477 = vmatpush2.msra.mxu0 0.0
    %478 = vmatprep.subr.mxu0 0.0
    %479 = vmatpush2.msra.mxu0 0.0
    %480 = vmatprep.subr.mxu0 0.0
    %481 = vmatpush2.msra.mxu0 0.0
    %482 = vmatprep.mubr.f32.mxu0 0.0
    %483 = vmatmul.mubr.f32.gmra.mxu0 %v416
    %v484 = vpop.f32.mrf.mxu0
    %v485 = vadd.f32 0.0, %v484
    %v486 = vpop.f32.mrf.mxu0
    %487 = vdwg.mxu0
    %v488 = vrcp.pop %v332
    %v489 = vrcp.pop %v335
    %v490 = vmul.f32 %v409, %v488
    %v491 = vmul.f32 %v485, %v489
    %v492 = vld [vmem:[#allocation7] sm:$0xff]
    %493 = vrot.lane.b32.xlu0 %v149, 120
    %v494 = vpop.permute.xlu0 %493
    %495 = vrot.lane.b32.xlu0 %v149, 88
    %v496 = vpop.permute.xlu0 %495
    %v497 = vsel %vm166, %v494, 0
    %v499 = vsel %vm166, %v496, 0
    %501 = vmatprep.subr.mxu0 0.0
    %502 = vmatpush1.xpose.msra.mxu0 0.0
    %503 = vmatprep.subr.mxu0 0.0
    %504 = vmatpush1.xpose.msra.mxu0 0.0
    %505 = vmatprep.subr.mxu0 0.0
    %506 = vmatpush1.xpose.msra.mxu0 0.0
    %507 = vmatprep.subr.mxu0 0.0
    %508 = vmatpush1.xpose.msra.mxu0 0.0
    %509 = vmatprep.subr.mxu0 0.0
    %510 = vmatpush1.xpose.msra.mxu0 0.0
    %511 = vmatprep.subr.mxu0 0.0
    %512 = vmatpush1.xpose.msra.mxu0 0.0
    %513 = vmatprep.subr.mxu0 0.0
    %514 = vmatpush1.xpose.msra.mxu0 0.0
    %515 = vmatprep.subr.mxu0 0.0
    %516 = vmatpush1.xpose.msra.mxu0 0.0
    %517 = vmatprep.subr.mxu0 0.0
    %518 = vmatpush1.xpose.msra.mxu0 0.0
    %519 = vmatprep.subr.mxu0 0.0
    %520 = vmatpush1.xpose.msra.mxu0 0.0
    %521 = vmatprep.subr.mxu0 0.0
    %522 = vmatpush1.xpose.msra.mxu0 0.0
    %523 = vmatprep.subr.mxu0 0.0
    %524 = vmatpush1.xpose.msra.mxu0 0.0
    %525 = vmatprep.subr.mxu0 0.0
    %526 = vmatpush1.xpose.msra.mxu0 0.0
    %527 = vmatprep.subr.mxu0 0.0
    %528 = vmatpush1.xpose.msra.mxu0 0.0
    %529 = vmatprep.subr.mxu0 0.0
    %530 = vmatpush1.xpose.msra.mxu0 0.0
    %531 = vmatprep.subr.mxu0 0.0
    %532 = vmatpush1.xpose.msra.mxu0 %v499
    %533 = vmatprep.subr.mxu0 0.0
    %534 = vmatpush2.xpose.msra.mxu0 0.0
    %535 = vmatprep.subr.mxu0 0.0
    %536 = vmatpush2.xpose.msra.mxu0 0.0
    %537 = vmatprep.subr.mxu0 0.0
    %538 = vmatpush2.xpose.msra.mxu0 0.0
    %539 = vmatprep.subr.mxu0 0.0
    %540 = vmatpush2.xpose.msra.mxu0 0.0
    %541 = vmatprep.subr.mxu0 0.0
    %542 = vmatpush2.xpose.msra.mxu0 0.0
    %543 = vmatprep.subr.mxu0 0.0
    %544 = vmatpush2.xpose.msra.mxu0 0.0
    %545 = vmatprep.subr.mxu0 0.0
    %546 = vmatpush2.xpose.msra.mxu0 0.0
    %547 = vmatprep.subr.mxu0 0.0
    %548 = vmatpush2.xpose.msra.mxu0 0.0
    %549 = vmatprep.subr.mxu0 0.0
    %550 = vmatpush2.xpose.msra.mxu0 0.0
    %551 = vmatprep.subr.mxu0 0.0
    %552 = vmatpush2.xpose.msra.mxu0 0.0
    %553 = vmatprep.subr.mxu0 0.0
    %554 = vmatpush2.xpose.msra.mxu0 0.0
    %555 = vmatprep.subr.mxu0 0.0
    %556 = vmatpush2.xpose.msra.mxu0 0.0
    %557 = vmatprep.subr.mxu0 0.0
    %558 = vmatpush2.xpose.msra.mxu0 0.0
    %559 = vmatprep.subr.mxu0 0.0
    %560 = vmatpush2.xpose.msra.mxu0 0.0
    %561 = vmatprep.subr.mxu0 0.0
    %562 = vmatpush2.xpose.msra.mxu0 0.0
    %563 = vmatprep.subr.mxu0 0.0
    %564 = vmatpush2.xpose.msra.mxu0 0.0
    %565 = vmatprep.mubr.f32.mxu0 0.0
    %566 = vmatmul.mubr.f32.gmra.mxu0 %v497
    %v567 = vpop.f32.mrf.mxu0
    %v568 = vadd.f32 %v162, %v567
    %v569 = vpop.f32.mrf.mxu0
    %570 = vdwg.mxu0
    %571 = vrot.lane.b32.xlu0 %v154, 120
    %v572 = vpop.permute.xlu0 %571
    %573 = vrot.lane.b32.xlu0 %v154, 88
    %v574 = vpop.permute.xlu0 %573
    %v575 = vsel %vm166, %v572, 0
    %v577 = vsel %vm166, %v574, 0
    %579 = vmatprep.subr.mxu0 0.0
    %580 = vmatpush1.xpose.msra.mxu0 0.0
    %581 = vmatprep.subr.mxu0 0.0
    %582 = vmatpush1.xpose.msra.mxu0 0.0
    %583 = vmatprep.subr.mxu0 0.0
    %584 = vmatpush1.xpose.msra.mxu0 0.0
    %585 = vmatprep.subr.mxu0 0.0
    %586 = vmatpush1.xpose.msra.mxu0 0.0
    %587 = vmatprep.subr.mxu0 0.0
    %588 = vmatpush1.xpose.msra.mxu0 0.0
    %589 = vmatprep.subr.mxu0 0.0
    %590 = vmatpush1.xpose.msra.mxu0 0.0
    %591 = vmatprep.subr.mxu0 0.0
    %592 = vmatpush1.xpose.msra.mxu0 0.0
    %593 = vmatprep.subr.mxu0 0.0
    %594 = vmatpush1.xpose.msra.mxu0 0.0
    %595 = vmatprep.subr.mxu0 0.0
    %596 = vmatpush1.xpose.msra.mxu0 0.0
    %597 = vmatprep.subr.mxu0 0.0
    %598 = vmatpush1.xpose.msra.mxu0 0.0
    %599 = vmatprep.subr.mxu0 0.0
    %600 = vmatpush1.xpose.msra.mxu0 0.0
    %601 = vmatprep.subr.mxu0 0.0
    %602 = vmatpush1.xpose.msra.mxu0 0.0
    %603 = vmatprep.subr.mxu0 0.0
    %604 = vmatpush1.xpose.msra.mxu0 0.0
    %605 = vmatprep.subr.mxu0 0.0
    %606 = vmatpush1.xpose.msra.mxu0 0.0
    %607 = vmatprep.subr.mxu0 0.0
    %608 = vmatpush1.xpose.msra.mxu0 0.0
    %609 = vmatprep.subr.mxu0 0.0
    %610 = vmatpush1.xpose.msra.mxu0 %v577
    %611 = vmatprep.subr.mxu0 0.0
    %612 = vmatpush2.xpose.msra.mxu0 0.0
    %613 = vmatprep.subr.mxu0 0.0
    %614 = vmatpush2.xpose.msra.mxu0 0.0
    %615 = vmatprep.subr.mxu0 0.0
    %616 = vmatpush2.xpose.msra.mxu0 0.0
    %617 = vmatprep.subr.mxu0 0.0
    %618 = vmatpush2.xpose.msra.mxu0 0.0
    %619 = vmatprep.subr.mxu0 0.0
    %620 = vmatpush2.xpose.msra.mxu0 0.0
    %621 = vmatprep.subr.mxu0 0.0
    %622 = vmatpush2.xpose.msra.mxu0 0.0
    %623 = vmatprep.subr.mxu0 0.0
    %624 = vmatpush2.xpose.msra.mxu0 0.0
    %625 = vmatprep.subr.mxu0 0.0
    %626 = vmatpush2.xpose.msra.mxu0 0.0
    %627 = vmatprep.subr.mxu0 0.0
    %628 = vmatpush2.xpose.msra.mxu0 0.0
    %629 = vmatprep.subr.mxu0 0.0
    %630 = vmatpush2.xpose.msra.mxu0 0.0
    %631 = vmatprep.subr.mxu0 0.0
    %632 = vmatpush2.xpose.msra.mxu0 0.0
    %633 = vmatprep.subr.mxu0 0.0
    %634 = vmatpush2.xpose.msra.mxu0 0.0
    %635 = vmatprep.subr.mxu0 0.0
    %636 = vmatpush2.xpose.msra.mxu0 0.0
    %637 = vmatprep.subr.mxu0 0.0
    %638 = vmatpush2.xpose.msra.mxu0 0.0
    %639 = vmatprep.subr.mxu0 0.0
    %640 = vmatpush2.xpose.msra.mxu0 0.0
    %641 = vmatprep.subr.mxu0 0.0
    %642 = vmatpush2.xpose.msra.mxu0 0.0
    %643 = vmatprep.mubr.f32.mxu0 0.0
    %644 = vmatmul.mubr.f32.gmra.mxu0 %v575
    %v645 = vpop.f32.mrf.mxu0
    %v646 = vadd.f32 %v162, %v645
    %v647 = vpop.f32.mrf.mxu0
    %648 = vdwg.mxu0
    %v649 = vsel %vm166, %v568, -inf
    %650 = vmax.xlane.f32.xlu0 %v649
    %v651 = vpop.xlane.xlu0 %650
    %v652 = vsel %vm166, %v646, -inf
    %653 = vmax.xlane.f32.xlu0 %v652
    %v654 = vpop.xlane.xlu0 %653
    %v655 = vsub.f32 %v568, %v651
    %v656 = vsub.f32 %v646, %v654
    %v657 = vmul.f32 %v655, 1.442695
    %v658 = vpow.pop %v657
    %v659 = vmul.f32 %v656, 1.442695
    %v660 = vpow.pop %v659
    %v661 = vsel %vm166, %v658, 0.0
    %662 = vadd.xlane.f32.xlu0 %v661
    %v663 = vpop.xlane.xlu0 %662
    %v664 = vsel %vm166, %v660, 0.0
    %665 = vadd.xlane.f32.xlu0 %v664
    %v666 = vpop.xlane.xlu0 %665
    %667 = vrot.lane.b32.xlu0 %v149, 56
    %v668 = vpop.permute.xlu0 %667
    %v671 = vsel %vm166, %v658, 0
    %673 = vmatprep.subr.mxu0 0.0
    %674 = vmatpush1.msra.mxu0 0.0
    %675 = vmatprep.subr.mxu0 0.0
    %676 = vmatpush1.msra.mxu0 0.0
    %677 = vmatprep.subr.mxu0 0.0
    %678 = vmatpush1.msra.mxu0 0.0
    %679 = vmatprep.subr.mxu0 0.0
    %680 = vmatpush1.msra.mxu0 0.0
    %681 = vmatprep.subr.mxu0 0.0
    %682 = vmatpush1.msra.mxu0 0.0
    %683 = vmatprep.subr.mxu0 0.0
    %684 = vmatpush1.msra.mxu0 0.0
    %685 = vmatprep.subr.mxu0 0.0
    %686 = vmatpush1.msra.mxu0 0.0
    %687 = vmatprep.subr.mxu0 0.0
    %688 = vmatpush1.msra.mxu0 0.0
    %689 = vmatprep.subr.mxu0 0.0
    %690 = vmatpush1.msra.mxu0 0.0
    %691 = vmatprep.subr.mxu0 0.0
    %692 = vmatpush1.msra.mxu0 0.0
    %693 = vmatprep.subr.mxu0 0.0
    %694 = vmatpush1.msra.mxu0 0.0
    %695 = vmatprep.subr.mxu0 0.0
    %696 = vmatpush1.msra.mxu0 0.0
    %697 = vmatprep.subr.mxu0 0.0
    %698 = vmatpush1.msra.mxu0 0.0
    %699 = vmatprep.subr.mxu0 0.0
    %700 = vmatpush1.msra.mxu0 0.0
    %701 = vmatprep.subr.mxu0 0.0
    %702 = vmatpush1.msra.mxu0 0.0
    %703 = vmatprep.subr.mxu0 0.0
    %704 = vmatpush1.msra.mxu0 %v668
    %705 = vmatprep.subr.mxu0 0.0
    %706 = vmatpush2.msra.mxu0 0.0
    %707 = vmatprep.subr.mxu0 0.0
    %708 = vmatpush2.msra.mxu0 0.0
    %709 = vmatprep.subr.mxu0 0.0
    %710 = vmatpush2.msra.mxu0 0.0
    %711 = vmatprep.subr.mxu0 0.0
    %712 = vmatpush2.msra.mxu0 0.0
    %713 = vmatprep.subr.mxu0 0.0
    %714 = vmatpush2.msra.mxu0 0.0
    %715 = vmatprep.subr.mxu0 0.0
    %716 = vmatpush2.msra.mxu0 0.0
    %717 = vmatprep.subr.mxu0 0.0
    %718 = vmatpush2.msra.mxu0 0.0
    %719 = vmatprep.subr.mxu0 0.0
    %720 = vmatpush2.msra.mxu0 0.0
    %721 = vmatprep.subr.mxu0 0.0
    %722 = vmatpush2.msra.mxu0 0.0
    %723 = vmatprep.subr.mxu0 0.0
    %724 = vmatpush2.msra.mxu0 0.0
    %725 = vmatprep.subr.mxu0 0.0
    %726 = vmatpush2.msra.mxu0 0.0
    %727 = vmatprep.subr.mxu0 0.0
    %728 = vmatpush2.msra.mxu0 0.0
    %729 = vmatprep.subr.mxu0 0.0
    %730 = vmatpush2.msra.mxu0 0.0
    %731 = vmatprep.subr.mxu0 0.0
    %732 = vmatpush2.msra.mxu0 0.0
    %733 = vmatprep.subr.mxu0 0.0
    %734 = vmatpush2.msra.mxu0 0.0
    %735 = vmatprep.subr.mxu0 0.0
    %736 = vmatpush2.msra.mxu0 0.0
    %737 = vmatprep.mubr.f32.mxu0 0.0
    %738 = vmatmul.mubr.f32.gmra.mxu0 %v671
    %v739 = vpop.f32.mrf.mxu0
    %v740 = vadd.f32 0.0, %v739
    %v741 = vpop.f32.mrf.mxu0
    %742 = vdwg.mxu0
    %743 = vrot.lane.b32.xlu0 %v154, 56
    %v744 = vpop.permute.xlu0 %743
    %v747 = vsel %vm166, %v660, 0
    %749 = vmatprep.subr.mxu0 0.0
    %750 = vmatpush1.msra.mxu0 0.0
    %751 = vmatprep.subr.mxu0 0.0
    %752 = vmatpush1.msra.mxu0 0.0
    %753 = vmatprep.subr.mxu0 0.0
    %754 = vmatpush1.msra.mxu0 0.0
    %755 = vmatprep.subr.mxu0 0.0
    %756 = vmatpush1.msra.mxu0 0.0
    %757 = vmatprep.subr.mxu0 0.0
    %758 = vmatpush1.msra.mxu0 0.0
    %759 = vmatprep.subr.mxu0 0.0
    %760 = vmatpush1.msra.mxu0 0.0
    %761 = vmatprep.subr.mxu0 0.0
    %762 = vmatpush1.msra.mxu0 0.0
    %763 = vmatprep.subr.mxu0 0.0
    %764 = vmatpush1.msra.mxu0 0.0
    %765 = vmatprep.subr.mxu0 0.0
    %766 = vmatpush1.msra.mxu0 0.0
    %767 = vmatprep.subr.mxu0 0.0
    %768 = vmatpush1.msra.mxu0 0.0
    %769 = vmatprep.subr.mxu0 0.0
    %770 = vmatpush1.msra.mxu0 0.0
    %771 = vmatprep.subr.mxu0 0.0
    %772 = vmatpush1.msra.mxu0 0.0
    %773 = vmatprep.subr.mxu0 0.0
    %774 = vmatpush1.msra.mxu0 0.0
    %775 = vmatprep.subr.mxu0 0.0
    %776 = vmatpush1.msra.mxu0 0.0
    %777 = vmatprep.subr.mxu0 0.0
    %778 = vmatpush1.msra.mxu0 0.0
    %779 = vmatprep.subr.mxu0 0.0
    %780 = vmatpush1.msra.mxu0 %v744
    %781 = vmatprep.subr.mxu0 0.0
    %782 = vmatpush2.msra.mxu0 0.0
    %783 = vmatprep.subr.mxu0 0.0
    %784 = vmatpush2.msra.mxu0 0.0
    %785 = vmatprep.subr.mxu0 0.0
    %786 = vmatpush2.msra.mxu0 0.0
    %787 = vmatprep.subr.mxu0 0.0
    %788 = vmatpush2.msra.mxu0 0.0
    %789 = vmatprep.subr.mxu0 0.0
    %790 = vmatpush2.msra.mxu0 0.0
    %791 = vmatprep.subr.mxu0 0.0
    %792 = vmatpush2.msra.mxu0 0.0
    %793 = vmatprep.subr.mxu0 0.0
    %794 = vmatpush2.msra.mxu0 0.0
    %795 = vmatprep.subr.mxu0 0.0
    %796 = vmatpush2.msra.mxu0 0.0
    %797 = vmatprep.subr.mxu0 0.0
    %798 = vmatpush2.msra.mxu0 0.0
    %799 = vmatprep.subr.mxu0 0.0
    %800 = vmatpush2.msra.mxu0 0.0
    %801 = vmatprep.subr.mxu0 0.0
    %802 = vmatpush2.msra.mxu0 0.0
    %803 = vmatprep.subr.mxu0 0.0
    %804 = vmatpush2.msra.mxu0 0.0
    %805 = vmatprep.subr.mxu0 0.0
    %806 = vmatpush2.msra.mxu0 0.0
    %807 = vmatprep.subr.mxu0 0.0
    %808 = vmatpush2.msra.mxu0 0.0
    %809 = vmatprep.subr.mxu0 0.0
    %810 = vmatpush2.msra.mxu0 0.0
    %811 = vmatprep.subr.mxu0 0.0
    %812 = vmatpush2.msra.mxu0 0.0
    %813 = vmatprep.mubr.f32.mxu0 0.0
    %814 = vmatmul.mubr.f32.gmra.mxu0 %v747
    %v815 = vpop.f32.mrf.mxu0
    %v816 = vadd.f32 0.0, %v815
    %v817 = vpop.f32.mrf.mxu0
    %818 = vdwg.mxu0
    %v819 = vrcp.pop %v663
    %v820 = vrcp.pop %v666
    %v821 = vmul.f32 %v740, %v819
    %v822 = vmul.f32 %v816, %v820
    %v823 = vld [vmem:[#allocation7 + $0x8] sm:$0xff]
    %v825 = vsel %vm166, %v821, 0
    %v828 = vsel %vm166, %v822, 0
    %830 = vmatprep.subr.mxu0 0.0
    %831 = vmatpush1.msra.mxu0 0.0
    %832 = vmatprep.subr.mxu0 0.0
    %833 = vmatpush1.msra.mxu0 0.0
    %834 = vmatprep.subr.mxu0 0.0
    %835 = vmatpush1.msra.mxu0 0.0
    %836 = vmatprep.subr.mxu0 0.0
    %837 = vmatpush1.msra.mxu0 0.0
    %838 = vmatprep.subr.mxu0 0.0
    %839 = vmatpush1.msra.mxu0 0.0
    %840 = vmatprep.subr.mxu0 0.0
    %841 = vmatpush1.msra.mxu0 0.0
    %842 = vmatprep.subr.mxu0 0.0
    %843 = vmatpush1.msra.mxu0 0.0
    %844 = vmatprep.subr.mxu0 0.0
    %845 = vmatpush1.msra.mxu0 0.0
    %846 = vmatprep.subr.mxu0 0.0
    %847 = vmatpush1.msra.mxu0 0.0
    %848 = vmatprep.subr.mxu0 0.0
    %849 = vmatpush1.msra.mxu0 0.0
    %850 = vmatprep.subr.mxu0 0.0
    %851 = vmatpush1.msra.mxu0 0.0
    %852 = vmatprep.subr.mxu0 0.0
    %853 = vmatpush1.msra.mxu0 0.0
    %854 = vmatprep.subr.mxu0 0.0
    %855 = vmatpush1.msra.mxu0 0.0
    %856 = vmatprep.subr.mxu0 0.0
    %857 = vmatpush1.msra.mxu0 0.0
    %858 = vmatprep.subr.mxu0 0.0
    %859 = vmatpush1.msra.mxu0 0.0
    %860 = vmatprep.subr.mxu0 0.0
    %861 = vmatpush1.msra.mxu0 %v823
    %862 = vmatprep.subr.mxu0 0.0
    %863 = vmatpush2.msra.mxu0 0.0
    %864 = vmatprep.subr.mxu0 0.0
    %865 = vmatpush2.msra.mxu0 0.0
    %866 = vmatprep.subr.mxu0 0.0
    %867 = vmatpush2.msra.mxu0 0.0
    %868 = vmatprep.subr.mxu0 0.0
    %869 = vmatpush2.msra.mxu0 0.0
    %870 = vmatprep.subr.mxu0 0.0
    %871 = vmatpush2.msra.mxu0 0.0
    %872 = vmatprep.subr.mxu0 0.0
    %873 = vmatpush2.msra.mxu0 0.0
    %874 = vmatprep.subr.mxu0 0.0
    %875 = vmatpush2.msra.mxu0 0.0
    %876 = vmatprep.subr.mxu0 0.0
    %877 = vmatpush2.msra.mxu0 0.0
    %878 = vmatprep.subr.mxu0 0.0
    %879 = vmatpush2.msra.mxu0 0.0
    %880 = vmatprep.subr.mxu0 0.0
    %881 = vmatpush2.msra.mxu0 0.0
    %882 = vmatprep.subr.mxu0 0.0
    %883 = vmatpush2.msra.mxu0 0.0
    %884 = vmatprep.subr.mxu0 0.0
    %885 = vmatpush2.msra.mxu0 0.0
    %886 = vmatprep.subr.mxu0 0.0
    %887 = vmatpush2.msra.mxu0 0.0
    %888 = vmatprep.subr.mxu0 0.0
    %889 = vmatpush2.msra.mxu0 0.0
    %890 = vmatprep.subr.mxu0 0.0
    %891 = vmatpush2.msra.mxu0 0.0
    %892 = vmatprep.subr.mxu0 0.0
    %893 = vmatpush2.msra.mxu0 0.0
    %894 = vmatprep.mubr.f32.mxu0 0.0
    %895 = vmatmul.mubr.f32.gmra.mxu0 %v825
    %v896 = vpop.f32.mrf.mxu0
    %v897 = vadd.f32 0.0, %v896
    %v898 = vpop.f32.mrf.mxu0
    %899 = vmatprep.mubr.f32.mxu0 0.0
    %900 = vmatmul.mubr.f32.gmra.mxu0 %v828
    %v901 = vpop.f32.mrf.mxu0
    %v902 = vadd.f32 0.0, %v901
    %v903 = vpop.f32.mrf.mxu0
    %904 = vdwg.mxu0
    %v906 = vsel %vm166, %v490, 0
    %v909 = vsel %vm166, %v491, 0
    %911 = vmatprep.subr.mxu0 0.0
    %912 = vmatpush1.msra.mxu0 0.0
    %913 = vmatprep.subr.mxu0 0.0
    %914 = vmatpush1.msra.mxu0 0.0
    %915 = vmatprep.subr.mxu0 0.0
    %916 = vmatpush1.msra.mxu0 0.0
    %917 = vmatprep.subr.mxu0 0.0
    %918 = vmatpush1.msra.mxu0 0.0
    %919 = vmatprep.subr.mxu0 0.0
    %920 = vmatpush1.msra.mxu0 0.0
    %921 = vmatprep.subr.mxu0 0.0
    %922 = vmatpush1.msra.mxu0 0.0
    %923 = vmatprep.subr.mxu0 0.0
    %924 = vmatpush1.msra.mxu0 0.0
    %925 = vmatprep.subr.mxu0 0.0
    %926 = vmatpush1.msra.mxu0 0.0
    %927 = vmatprep.subr.mxu0 0.0
    %928 = vmatpush1.msra.mxu0 0.0
    %929 = vmatprep.subr.mxu0 0.0
    %930 = vmatpush1.msra.mxu0 0.0
    %931 = vmatprep.subr.mxu0 0.0
    %932 = vmatpush1.msra.mxu0 0.0
    %933 = vmatprep.subr.mxu0 0.0
    %934 = vmatpush1.msra.mxu0 0.0
    %935 = vmatprep.subr.mxu0 0.0
    %936 = vmatpush1.msra.mxu0 0.0
    %937 = vmatprep.subr.mxu0 0.0
    %938 = vmatpush1.msra.mxu0 0.0
    %939 = vmatprep.subr.mxu0 0.0
    %940 = vmatpush1.msra.mxu0 0.0
    %941 = vmatprep.subr.mxu0 0.0
    %942 = vmatpush1.msra.mxu0 %v492
    %943 = vmatprep.subr.mxu0 0.0
    %944 = vmatpush2.msra.mxu0 0.0
    %945 = vmatprep.subr.mxu0 0.0
    %946 = vmatpush2.msra.mxu0 0.0
    %947 = vmatprep.subr.mxu0 0.0
    %948 = vmatpush2.msra.mxu0 0.0
    %949 = vmatprep.subr.mxu0 0.0
    %950 = vmatpush2.msra.mxu0 0.0
    %951 = vmatprep.subr.mxu0 0.0
    %952 = vmatpush2.msra.mxu0 0.0
    %953 = vmatprep.subr.mxu0 0.0
    %954 = vmatpush2.msra.mxu0 0.0
    %955 = vmatprep.subr.mxu0 0.0
    %956 = vmatpush2.msra.mxu0 0.0
    %957 = vmatprep.subr.mxu0 0.0
    %958 = vmatpush2.msra.mxu0 0.0
    %959 = vmatprep.subr.mxu0 0.0
    %960 = vmatpush2.msra.mxu0 0.0
    %961 = vmatprep.subr.mxu0 0.0
    %962 = vmatpush2.msra.mxu0 0.0
    %963 = vmatprep.subr.mxu0 0.0
    %964 = vmatpush2.msra.mxu0 0.0
    %965 = vmatprep.subr.mxu0 0.0
    %966 = vmatpush2.msra.mxu0 0.0
    %967 = vmatprep.subr.mxu0 0.0
    %968 = vmatpush2.msra.mxu0 0.0
    %969 = vmatprep.subr.mxu0 0.0
    %970 = vmatpush2.msra.mxu0 0.0
    %971 = vmatprep.subr.mxu0 0.0
    %972 = vmatpush2.msra.mxu0 0.0
    %973 = vmatprep.subr.mxu0 0.0
    %974 = vmatpush2.msra.mxu0 0.0
    %975 = vmatprep.mubr.f32.mxu0 0.0
    %976 = vmatmul.mubr.f32.gmra.mxu0 %v906
    %v977 = vpop.f32.mrf.mxu0
    %v978 = vadd.f32 %v897, %v977
    %v979 = vpop.f32.mrf.mxu0
    %980 = vmatprep.mubr.f32.mxu0 0.0
    %981 = vmatmul.mubr.f32.gmra.mxu0 %v909
    %v982 = vpop.f32.mrf.mxu0
    %v983 = vadd.f32 %v902, %v982
    %v984 = vpop.f32.mrf.mxu0
    %985 = vdwg.mxu0
    %986 = vrot.lane.b32.xlu0 %v149, 112
    %v987 = vpop.permute.xlu0 %986
    %988 = vrot.lane.b32.xlu0 %v149, 80
    %v989 = vpop.permute.xlu0 %988
    %v990 = vsel %vm166, %v987, 0
    %v992 = vsel %vm166, %v989, 0
    %994 = vmatprep.subr.mxu0 0.0
    %995 = vmatpush1.xpose.msra.mxu0 0.0
    %996 = vmatprep.subr.mxu0 0.0
    %997 = vmatpush1.xpose.msra.mxu0 0.0
    %998 = vmatprep.subr.mxu0 0.0
    %999 = vmatpush1.xpose.msra.mxu0 0.0
    %1000 = vmatprep.subr.mxu0 0.0
    %1001 = vmatpush1.xpose.msra.mxu0 0.0
    %1002 = vmatprep.subr.mxu0 0.0
    %1003 = vmatpush1.xpose.msra.mxu0 0.0
    %1004 = vmatprep.subr.mxu0 0.0
    %1005 = vmatpush1.xpose.msra.mxu0 0.0
    %1006 = vmatprep.subr.mxu0 0.0
    %1007 = vmatpush1.xpose.msra.mxu0 0.0
    %1008 = vmatprep.subr.mxu0 0.0
    %1009 = vmatpush1.xpose.msra.mxu0 0.0
    %1010 = vmatprep.subr.mxu0 0.0
    %1011 = vmatpush1.xpose.msra.mxu0 0.0
    %1012 = vmatprep.subr.mxu0 0.0
    %1013 = vmatpush1.xpose.msra.mxu0 0.0
    %1014 = vmatprep.subr.mxu0 0.0
    %1015 = vmatpush1.xpose.msra.mxu0 0.0
    %1016 = vmatprep.subr.mxu0 0.0
    %1017 = vmatpush1.xpose.msra.mxu0 0.0
    %1018 = vmatprep.subr.mxu0 0.0
    %1019 = vmatpush1.xpose.msra.mxu0 0.0
    %1020 = vmatprep.subr.mxu0 0.0
    %1021 = vmatpush1.xpose.msra.mxu0 0.0
    %1022 = vmatprep.subr.mxu0 0.0
    %1023 = vmatpush1.xpose.msra.mxu0 0.0
    %1024 = vmatprep.subr.mxu0 0.0
    %1025 = vmatpush1.xpose.msra.mxu0 %v992
    %1026 = vmatprep.subr.mxu0 0.0
    %1027 = vmatpush2.xpose.msra.mxu0 0.0
    %1028 = vmatprep.subr.mxu0 0.0
    %1029 = vmatpush2.xpose.msra.mxu0 0.0
    %1030 = vmatprep.subr.mxu0 0.0
    %1031 = vmatpush2.xpose.msra.mxu0 0.0
    %1032 = vmatprep.subr.mxu0 0.0
    %1033 = vmatpush2.xpose.msra.mxu0 0.0
    %1034 = vmatprep.subr.mxu0 0.0
    %1035 = vmatpush2.xpose.msra.mxu0 0.0
    %1036 = vmatprep.subr.mxu0 0.0
    %1037 = vmatpush2.xpose.msra.mxu0 0.0
    %1038 = vmatprep.subr.mxu0 0.0
    %1039 = vmatpush2.xpose.msra.mxu0 0.0
    %1040 = vmatprep.subr.mxu0 0.0
    %1041 = vmatpush2.xpose.msra.mxu0 0.0
    %1042 = vmatprep.subr.mxu0 0.0
    %1043 = vmatpush2.xpose.msra.mxu0 0.0
    %1044 = vmatprep.subr.mxu0 0.0
    %1045 = vmatpush2.xpose.msra.mxu0 0.0
    %1046 = vmatprep.subr.mxu0 0.0
    %1047 = vmatpush2.xpose.msra.mxu0 0.0
    %1048 = vmatprep.subr.mxu0 0.0
    %1049 = vmatpush2.xpose.msra.mxu0 0.0
    %1050 = vmatprep.subr.mxu0 0.0
    %1051 = vmatpush2.xpose.msra.mxu0 0.0
    %1052 = vmatprep.subr.mxu0 0.0
    %1053 = vmatpush2.xpose.msra.mxu0 0.0
    %1054 = vmatprep.subr.mxu0 0.0
    %1055 = vmatpush2.xpose.msra.mxu0 0.0
    %1056 = vmatprep.subr.mxu0 0.0
    %1057 = vmatpush2.xpose.msra.mxu0 0.0
    %1058 = vmatprep.mubr.f32.mxu0 0.0
    %1059 = vmatmul.mubr.f32.gmra.mxu0 %v990
    %v1060 = vpop.f32.mrf.mxu0
    %v1061 = vadd.f32 %v162, %v1060
    %v1062 = vpop.f32.mrf.mxu0
    %1063 = vdwg.mxu0
    %1064 = vrot.lane.b32.xlu0 %v154, 112
    %v1065 = vpop.permute.xlu0 %1064
    %1066 = vrot.lane.b32.xlu0 %v154, 80
    %v1067 = vpop.permute.xlu0 %1066
    %v1068 = vsel %vm166, %v1065, 0
    %v1070 = vsel %vm166, %v1067, 0
    %1072 = vmatprep.subr.mxu0 0.0
    %1073 = vmatpush1.xpose.msra.mxu0 0.0
    %1074 = vmatprep.subr.mxu0 0.0
    %1075 = vmatpush1.xpose.msra.mxu0 0.0
    %1076 = vmatprep.subr.mxu0 0.0
    %1077 = vmatpush1.xpose.msra.mxu0 0.0
    %1078 = vmatprep.subr.mxu0 0.0
    %1079 = vmatpush1.xpose.msra.mxu0 0.0
    %1080 = vmatprep.subr.mxu0 0.0
    %1081 = vmatpush1.xpose.msra.mxu0 0.0
    %1082 = vmatprep.subr.mxu0 0.0
    %1083 = vmatpush1.xpose.msra.mxu0 0.0
    %1084 = vmatprep.subr.mxu0 0.0
    %1085 = vmatpush1.xpose.msra.mxu0 0.0
    %1086 = vmatprep.subr.mxu0 0.0
    %1087 = vmatpush1.xpose.msra.mxu0 0.0
    %1088 = vmatprep.subr.mxu0 0.0
    %1089 = vmatpush1.xpose.msra.mxu0 0.0
    %1090 = vmatprep.subr.mxu0 0.0
    %1091 = vmatpush1.xpose.msra.mxu0 0.0
    %1092 = vmatprep.subr.mxu0 0.0
    %1093 = vmatpush1.xpose.msra.mxu0 0.0
    %1094 = vmatprep.subr.mxu0 0.0
    %1095 = vmatpush1.xpose.msra.mxu0 0.0
    %1096 = vmatprep.subr.mxu0 0.0
    %1097 = vmatpush1.xpose.msra.mxu0 0.0
    %1098 = vmatprep.subr.mxu0 0.0
    %1099 = vmatpush1.xpose.msra.mxu0 0.0
    %1100 = vmatprep.subr.mxu0 0.0
    %1101 = vmatpush1.xpose.msra.mxu0 0.0
    %1102 = vmatprep.subr.mxu0 0.0
    %1103 = vmatpush1.xpose.msra.mxu0 %v1070
    %1104 = vmatprep.subr.mxu0 0.0
    %1105 = vmatpush2.xpose.msra.mxu0 0.0
    %1106 = vmatprep.subr.mxu0 0.0
    %1107 = vmatpush2.xpose.msra.mxu0 0.0
    %1108 = vmatprep.subr.mxu0 0.0
    %1109 = vmatpush2.xpose.msra.mxu0 0.0
    %1110 = vmatprep.subr.mxu0 0.0
    %1111 = vmatpush2.xpose.msra.mxu0 0.0
    %1112 = vmatprep.subr.mxu0 0.0
    %1113 = vmatpush2.xpose.msra.mxu0 0.0
    %1114 = vmatprep.subr.mxu0 0.0
    %1115 = vmatpush2.xpose.msra.mxu0 0.0
    %1116 = vmatprep.subr.mxu0 0.0
    %1117 = vmatpush2.xpose.msra.mxu0 0.0
    %1118 = vmatprep.subr.mxu0 0.0
    %1119 = vmatpush2.xpose.msra.mxu0 0.0
    %1120 = vmatprep.subr.mxu0 0.0
    %1121 = vmatpush2.xpose.msra.mxu0 0.0
    %1122 = vmatprep.subr.mxu0 0.0
    %1123 = vmatpush2.xpose.msra.mxu0 0.0
    %1124 = vmatprep.subr.mxu0 0.0
    %1125 = vmatpush2.xpose.msra.mxu0 0.0
    %1126 = vmatprep.subr.mxu0 0.0
    %1127 = vmatpush2.xpose.msra.mxu0 0.0
    %1128 = vmatprep.subr.mxu0 0.0
    %1129 = vmatpush2.xpose.msra.mxu0 0.0
    %1130 = vmatprep.subr.mxu0 0.0
    %1131 = vmatpush2.xpose.msra.mxu0 0.0
    %1132 = vmatprep.subr.mxu0 0.0
    %1133 = vmatpush2.xpose.msra.mxu0 0.0
    %1134 = vmatprep.subr.mxu0 0.0
    %1135 = vmatpush2.xpose.msra.mxu0 0.0
    %1136 = vmatprep.mubr.f32.mxu0 0.0
    %1137 = vmatmul.mubr.f32.gmra.mxu0 %v1068
    %v1138 = vpop.f32.mrf.mxu0
    %v1139 = vadd.f32 %v162, %v1138
    %v1140 = vpop.f32.mrf.mxu0
    %1141 = vdwg.mxu0
    %v1142 = vsel %vm166, %v1061, -inf
    %1143 = vmax.xlane.f32.xlu0 %v1142
    %v1144 = vpop.xlane.xlu0 %1143
    %v1145 = vsel %vm166, %v1139, -inf
    %1146 = vmax.xlane.f32.xlu0 %v1145
    %v1147 = vpop.xlane.xlu0 %1146
    %v1148 = vsub.f32 %v1061, %v1144
    %v1149 = vsub.f32 %v1139, %v1147
    %v1150 = vmul.f32 %v1148, 1.442695
    %v1151 = vpow.pop %v1150
    %v1152 = vmul.f32 %v1149, 1.442695
    %v1153 = vpow.pop %v1152
    %v1154 = vsel %vm166, %v1151, 0.0
    %1155 = vadd.xlane.f32.xlu0 %v1154
    %v1156 = vpop.xlane.xlu0 %1155
    %v1157 = vsel %vm166, %v1153, 0.0
    %1158 = vadd.xlane.f32.xlu0 %v1157
    %v1159 = vpop.xlane.xlu0 %1158
    %1160 = vrot.lane.b32.xlu0 %v149, 48
    %v1161 = vpop.permute.xlu0 %1160
    %v1164 = vsel %vm166, %v1151, 0
    %1166 = vmatprep.subr.mxu0 0.0
    %1167 = vmatpush1.msra.mxu0 0.0
    %1168 = vmatprep.subr.mxu0 0.0
    %1169 = vmatpush1.msra.mxu0 0.0
    %1170 = vmatprep.subr.mxu0 0.0
    %1171 = vmatpush1.msra.mxu0 0.0
    %1172 = vmatprep.subr.mxu0 0.0
    %1173 = vmatpush1.msra.mxu0 0.0
    %1174 = vmatprep.subr.mxu0 0.0
    %1175 = vmatpush1.msra.mxu0 0.0
    %1176 = vmatprep.subr.mxu0 0.0
    %1177 = vmatpush1.msra.mxu0 0.0
    %1178 = vmatprep.subr.mxu0 0.0
    %1179 = vmatpush1.msra.mxu0 0.0
    %1180 = vmatprep.subr.mxu0 0.0
    %1181 = vmatpush1.msra.mxu0 0.0
    %1182 = vmatprep.subr.mxu0 0.0
    %1183 = vmatpush1.msra.mxu0 0.0
    %1184 = vmatprep.subr.mxu0 0.0
    %1185 = vmatpush1.msra.mxu0 0.0
    %1186 = vmatprep.subr.mxu0 0.0
    %1187 = vmatpush1.msra.mxu0 0.0
    %1188 = vmatprep.subr.mxu0 0.0
    %1189 = vmatpush1.msra.mxu0 0.0
    %1190 = vmatprep.subr.mxu0 0.0
    %1191 = vmatpush1.msra.mxu0 0.0
    %1192 = vmatprep.subr.mxu0 0.0
    %1193 = vmatpush1.msra.mxu0 0.0
    %1194 = vmatprep.subr.mxu0 0.0
    %1195 = vmatpush1.msra.mxu0 0.0
    %1196 = vmatprep.subr.mxu0 0.0
    %1197 = vmatpush1.msra.mxu0 %v1161
    %1198 = vmatprep.subr.mxu0 0.0
    %1199 = vmatpush2.msra.mxu0 0.0
    %1200 = vmatprep.subr.mxu0 0.0
    %1201 = vmatpush2.msra.mxu0 0.0
    %1202 = vmatprep.subr.mxu0 0.0
    %1203 = vmatpush2.msra.mxu0 0.0
    %1204 = vmatprep.subr.mxu0 0.0
    %1205 = vmatpush2.msra.mxu0 0.0
    %1206 = vmatprep.subr.mxu0 0.0
    %1207 = vmatpush2.msra.mxu0 0.0
    %1208 = vmatprep.subr.mxu0 0.0
    %1209 = vmatpush2.msra.mxu0 0.0
    %1210 = vmatprep.subr.mxu0 0.0
    %1211 = vmatpush2.msra.mxu0 0.0
    %1212 = vmatprep.subr.mxu0 0.0
    %1213 = vmatpush2.msra.mxu0 0.0
    %1214 = vmatprep.subr.mxu0 0.0
    %1215 = vmatpush2.msra.mxu0 0.0
    %1216 = vmatprep.subr.mxu0 0.0
    %1217 = vmatpush2.msra.mxu0 0.0
    %1218 = vmatprep.subr.mxu0 0.0
    %1219 = vmatpush2.msra.mxu0 0.0
    %1220 = vmatprep.subr.mxu0 0.0
    %1221 = vmatpush2.msra.mxu0 0.0
    %1222 = vmatprep.subr.mxu0 0.0
    %1223 = vmatpush2.msra.mxu0 0.0
    %1224 = vmatprep.subr.mxu0 0.0
    %1225 = vmatpush2.msra.mxu0 0.0
    %1226 = vmatprep.subr.mxu0 0.0
    %1227 = vmatpush2.msra.mxu0 0.0
    %1228 = vmatprep.subr.mxu0 0.0
    %1229 = vmatpush2.msra.mxu0 0.0
    %1230 = vmatprep.mubr.f32.mxu0 0.0
    %1231 = vmatmul.mubr.f32.gmra.mxu0 %v1164
    %v1232 = vpop.f32.mrf.mxu0
    %v1233 = vadd.f32 0.0, %v1232
    %v1234 = vpop.f32.mrf.mxu0
    %1235 = vdwg.mxu0
    %1236 = vrot.lane.b32.xlu0 %v154, 48
    %v1237 = vpop.permute.xlu0 %1236
    %v1240 = vsel %vm166, %v1153, 0
    %1242 = vmatprep.subr.mxu0 0.0
    %1243 = vmatpush1.msra.mxu0 0.0
    %1244 = vmatprep.subr.mxu0 0.0
    %1245 = vmatpush1.msra.mxu0 0.0
    %1246 = vmatprep.subr.mxu0 0.0
    %1247 = vmatpush1.msra.mxu0 0.0
    %1248 = vmatprep.subr.mxu0 0.0
    %1249 = vmatpush1.msra.mxu0 0.0
    %1250 = vmatprep.subr.mxu0 0.0
    %1251 = vmatpush1.msra.mxu0 0.0
    %1252 = vmatprep.subr.mxu0 0.0
    %1253 = vmatpush1.msra.mxu0 0.0
    %1254 = vmatprep.subr.mxu0 0.0
    %1255 = vmatpush1.msra.mxu0 0.0
    %1256 = vmatprep.subr.mxu0 0.0
    %1257 = vmatpush1.msra.mxu0 0.0
    %1258 = vmatprep.subr.mxu0 0.0
    %1259 = vmatpush1.msra.mxu0 0.0
    %1260 = vmatprep.subr.mxu0 0.0
    %1261 = vmatpush1.msra.mxu0 0.0
    %1262 = vmatprep.subr.mxu0 0.0
    %1263 = vmatpush1.msra.mxu0 0.0
    %1264 = vmatprep.subr.mxu0 0.0
    %1265 = vmatpush1.msra.mxu0 0.0
    %1266 = vmatprep.subr.mxu0 0.0
    %1267 = vmatpush1.msra.mxu0 0.0
    %1268 = vmatprep.subr.mxu0 0.0
    %1269 = vmatpush1.msra.mxu0 0.0
    %1270 = vmatprep.subr.mxu0 0.0
    %1271 = vmatpush1.msra.mxu0 0.0
    %1272 = vmatprep.subr.mxu0 0.0
    %1273 = vmatpush1.msra.mxu0 %v1237
    %1274 = vmatprep.subr.mxu0 0.0
    %1275 = vmatpush2.msra.mxu0 0.0
    %1276 = vmatprep.subr.mxu0 0.0
    %1277 = vmatpush2.msra.mxu0 0.0
    %1278 = vmatprep.subr.mxu0 0.0
    %1279 = vmatpush2.msra.mxu0 0.0
    %1280 = vmatprep.subr.mxu0 0.0
    %1281 = vmatpush2.msra.mxu0 0.0
    %1282 = vmatprep.subr.mxu0 0.0
    %1283 = vmatpush2.msra.mxu0 0.0
    %1284 = vmatprep.subr.mxu0 0.0
    %1285 = vmatpush2.msra.mxu0 0.0
    %1286 = vmatprep.subr.mxu0 0.0
    %1287 = vmatpush2.msra.mxu0 0.0
    %1288 = vmatprep.subr.mxu0 0.0
    %1289 = vmatpush2.msra.mxu0 0.0
    %1290 = vmatprep.subr.mxu0 0.0
    %1291 = vmatpush2.msra.mxu0 0.0
    %1292 = vmatprep.subr.mxu0 0.0
    %1293 = vmatpush2.msra.mxu0 0.0
    %1294 = vmatprep.subr.mxu0 0.0
    %1295 = vmatpush2.msra.mxu0 0.0
    %1296 = vmatprep.subr.mxu0 0.0
    %1297 = vmatpush2.msra.mxu0 0.0
    %1298 = vmatprep.subr.mxu0 0.0
    %1299 = vmatpush2.msra.mxu0 0.0
    %1300 = vmatprep.subr.mxu0 0.0
    %1301 = vmatpush2.msra.mxu0 0.0
    %1302 = vmatprep.subr.mxu0 0.0
    %1303 = vmatpush2.msra.mxu0 0.0
    %1304 = vmatprep.subr.mxu0 0.0
    %1305 = vmatpush2.msra.mxu0 0.0
    %1306 = vmatprep.mubr.f32.mxu0 0.0
    %1307 = vmatmul.mubr.f32.gmra.mxu0 %v1240
    %v1308 = vpop.f32.mrf.mxu0
    %v1309 = vadd.f32 0.0, %v1308
    %v1310 = vpop.f32.mrf.mxu0
    %1311 = vdwg.mxu0
    %v1312 = vrcp.pop %v1156
    %v1313 = vrcp.pop %v1159
    %v1314 = vmul.f32 %v1233, %v1312
    %v1315 = vmul.f32 %v1309, %v1313
    %v1316 = vld [vmem:[#allocation7 + $0x10] sm:$0xff]
    %v1318 = vsel %vm166, %v1314, 0
    %v1321 = vsel %vm166, %v1315, 0
    %1323 = vmatprep.subr.mxu0 0.0
    %1324 = vmatpush1.msra.mxu0 0.0
    %1325 = vmatprep.subr.mxu0 0.0
    %1326 = vmatpush1.msra.mxu0 0.0
    %1327 = vmatprep.subr.mxu0 0.0
    %1328 = vmatpush1.msra.mxu0 0.0
    %1329 = vmatprep.subr.mxu0 0.0
    %1330 = vmatpush1.msra.mxu0 0.0
    %1331 = vmatprep.subr.mxu0 0.0
    %1332 = vmatpush1.msra.mxu0 0.0
    %1333 = vmatprep.subr.mxu0 0.0
    %1334 = vmatpush1.msra.mxu0 0.0
    %1335 = vmatprep.subr.mxu0 0.0
    %1336 = vmatpush1.msra.mxu0 0.0
    %1337 = vmatprep.subr.mxu0 0.0
    %1338 = vmatpush1.msra.mxu0 0.0
    %1339 = vmatprep.subr.mxu0 0.0
    %1340 = vmatpush1.msra.mxu0 0.0
    %1341 = vmatprep.subr.mxu0 0.0
    %1342 = vmatpush1.msra.mxu0 0.0
    %1343 = vmatprep.subr.mxu0 0.0
    %1344 = vmatpush1.msra.mxu0 0.0
    %1345 = vmatprep.subr.mxu0 0.0
    %1346 = vmatpush1.msra.mxu0 0.0
    %1347 = vmatprep.subr.mxu0 0.0
    %1348 = vmatpush1.msra.mxu0 0.0
    %1349 = vmatprep.subr.mxu0 0.0
    %1350 = vmatpush1.msra.mxu0 0.0
    %1351 = vmatprep.subr.mxu0 0.0
    %1352 = vmatpush1.msra.mxu0 0.0
    %1353 = vmatprep.subr.mxu0 0.0
    %1354 = vmatpush1.msra.mxu0 %v1316
    %1355 = vmatprep.subr.mxu0 0.0
    %1356 = vmatpush2.msra.mxu0 0.0
    %1357 = vmatprep.subr.mxu0 0.0
    %1358 = vmatpush2.msra.mxu0 0.0
    %1359 = vmatprep.subr.mxu0 0.0
    %1360 = vmatpush2.msra.mxu0 0.0
    %1361 = vmatprep.subr.mxu0 0.0
    %1362 = vmatpush2.msra.mxu0 0.0
    %1363 = vmatprep.subr.mxu0 0.0
    %1364 = vmatpush2.msra.mxu0 0.0
    %1365 = vmatprep.subr.mxu0 0.0
    %1366 = vmatpush2.msra.mxu0 0.0
    %1367 = vmatprep.subr.mxu0 0.0
    %1368 = vmatpush2.msra.mxu0 0.0
    %1369 = vmatprep.subr.mxu0 0.0
    %1370 = vmatpush2.msra.mxu0 0.0
    %1371 = vmatprep.subr.mxu0 0.0
    %1372 = vmatpush2.msra.mxu0 0.0
    %1373 = vmatprep.subr.mxu0 0.0
    %1374 = vmatpush2.msra.mxu0 0.0
    %1375 = vmatprep.subr.mxu0 0.0
    %1376 = vmatpush2.msra.mxu0 0.0
    %1377 = vmatprep.subr.mxu0 0.0
    %1378 = vmatpush2.msra.mxu0 0.0
    %1379 = vmatprep.subr.mxu0 0.0
    %1380 = vmatpush2.msra.mxu0 0.0
    %1381 = vmatprep.subr.mxu0 0.0
    %1382 = vmatpush2.msra.mxu0 0.0
    %1383 = vmatprep.subr.mxu0 0.0
    %1384 = vmatpush2.msra.mxu0 0.0
    %1385 = vmatprep.subr.mxu0 0.0
    %1386 = vmatpush2.msra.mxu0 0.0
    %1387 = vmatprep.mubr.f32.mxu0 0.0
    %1388 = vmatmul.mubr.f32.gmra.mxu0 %v1318
    %v1389 = vpop.f32.mrf.mxu0
    %v1390 = vadd.f32 0.0, %v1389
    %v1391 = vpop.f32.mrf.mxu0
    %1392 = vmatprep.mubr.f32.mxu0 0.0
    %1393 = vmatmul.mubr.f32.gmra.mxu0 %v1321
    %v1394 = vpop.f32.mrf.mxu0
    %v1395 = vadd.f32 0.0, %v1394
    %v1396 = vpop.f32.mrf.mxu0
    %1397 = vdwg.mxu0
    %v1398 = vadd.f32 %v978, %v1390
    %v1399 = vadd.f32 %v983, %v1395
    %1400 = vrot.lane.b32.xlu0 %v149, 104
    %v1401 = vpop.permute.xlu0 %1400
    %1402 = vrot.lane.b32.xlu0 %v149, 72
    %v1403 = vpop.permute.xlu0 %1402
    %v1404 = vsel %vm166, %v1401, 0
    %v1406 = vsel %vm166, %v1403, 0
    %1408 = vmatprep.subr.mxu0 0.0
    %1409 = vmatpush1.xpose.msra.mxu0 0.0
    %1410 = vmatprep.subr.mxu0 0.0
    %1411 = vmatpush1.xpose.msra.mxu0 0.0
    %1412 = vmatprep.subr.mxu0 0.0
    %1413 = vmatpush1.xpose.msra.mxu0 0.0
    %1414 = vmatprep.subr.mxu0 0.0
    %1415 = vmatpush1.xpose.msra.mxu0 0.0
    %1416 = vmatprep.subr.mxu0 0.0
    %1417 = vmatpush1.xpose.msra.mxu0 0.0
    %1418 = vmatprep.subr.mxu0 0.0
    %1419 = vmatpush1.xpose.msra.mxu0 0.0
    %1420 = vmatprep.subr.mxu0 0.0
    %1421 = vmatpush1.xpose.msra.mxu0 0.0
    %1422 = vmatprep.subr.mxu0 0.0
    %1423 = vmatpush1.xpose.msra.mxu0 0.0
    %1424 = vmatprep.subr.mxu0 0.0
    %1425 = vmatpush1.xpose.msra.mxu0 0.0
    %1426 = vmatprep.subr.mxu0 0.0
    %1427 = vmatpush1.xpose.msra.mxu0 0.0
    %1428 = vmatprep.subr.mxu0 0.0
    %1429 = vmatpush1.xpose.msra.mxu0 0.0
    %1430 = vmatprep.subr.mxu0 0.0
    %1431 = vmatpush1.xpose.msra.mxu0 0.0
    %1432 = vmatprep.subr.mxu0 0.0
    %1433 = vmatpush1.xpose.msra.mxu0 0.0
    %1434 = vmatprep.subr.mxu0 0.0
    %1435 = vmatpush1.xpose.msra.mxu0 0.0
    %1436 = vmatprep.subr.mxu0 0.0
    %1437 = vmatpush1.xpose.msra.mxu0 0.0
    %1438 = vmatprep.subr.mxu0 0.0
    %1439 = vmatpush1.xpose.msra.mxu0 %v1406
    %1440 = vmatprep.subr.mxu0 0.0
    %1441 = vmatpush2.xpose.msra.mxu0 0.0
    %1442 = vmatprep.subr.mxu0 0.0
    %1443 = vmatpush2.xpose.msra.mxu0 0.0
    %1444 = vmatprep.subr.mxu0 0.0
    %1445 = vmatpush2.xpose.msra.mxu0 0.0
    %1446 = vmatprep.subr.mxu0 0.0
    %1447 = vmatpush2.xpose.msra.mxu0 0.0
    %1448 = vmatprep.subr.mxu0 0.0
    %1449 = vmatpush2.xpose.msra.mxu0 0.0
    %1450 = vmatprep.subr.mxu0 0.0
    %1451 = vmatpush2.xpose.msra.mxu0 0.0
    %1452 = vmatprep.subr.mxu0 0.0
    %1453 = vmatpush2.xpose.msra.mxu0 0.0
    %1454 = vmatprep.subr.mxu0 0.0
    %1455 = vmatpush2.xpose.msra.mxu0 0.0
    %1456 = vmatprep.subr.mxu0 0.0
    %1457 = vmatpush2.xpose.msra.mxu0 0.0
    %1458 = vmatprep.subr.mxu0 0.0
    %1459 = vmatpush2.xpose.msra.mxu0 0.0
    %1460 = vmatprep.subr.mxu0 0.0
    %1461 = vmatpush2.xpose.msra.mxu0 0.0
    %1462 = vmatprep.subr.mxu0 0.0
    %1463 = vmatpush2.xpose.msra.mxu0 0.0
    %1464 = vmatprep.subr.mxu0 0.0
    %1465 = vmatpush2.xpose.msra.mxu0 0.0
    %1466 = vmatprep.subr.mxu0 0.0
    %1467 = vmatpush2.xpose.msra.mxu0 0.0
    %1468 = vmatprep.subr.mxu0 0.0
    %1469 = vmatpush2.xpose.msra.mxu0 0.0
    %1470 = vmatprep.subr.mxu0 0.0
    %1471 = vmatpush2.xpose.msra.mxu0 0.0
    %1472 = vmatprep.mubr.f32.mxu0 0.0
    %1473 = vmatmul.mubr.f32.gmra.mxu0 %v1404
    %v1474 = vpop.f32.mrf.mxu0
    %v1475 = vadd.f32 %v162, %v1474
    %v1476 = vpop.f32.mrf.mxu0
    %1477 = vdwg.mxu0
    %1478 = vrot.lane.b32.xlu0 %v154, 104
    %v1479 = vpop.permute.xlu0 %1478
    %1480 = vrot.lane.b32.xlu0 %v154, 72
    %v1481 = vpop.permute.xlu0 %1480
    %v1482 = vsel %vm166, %v1479, 0
    %v1484 = vsel %vm166, %v1481, 0
    %1486 = vmatprep.subr.mxu0 0.0
    %1487 = vmatpush1.xpose.msra.mxu0 0.0
    %1488 = vmatprep.subr.mxu0 0.0
    %1489 = vmatpush1.xpose.msra.mxu0 0.0
    %1490 = vmatprep.subr.mxu0 0.0
    %1491 = vmatpush1.xpose.msra.mxu0 0.0
    %1492 = vmatprep.subr.mxu0 0.0
    %1493 = vmatpush1.xpose.msra.mxu0 0.0
    %1494 = vmatprep.subr.mxu0 0.0
    %1495 = vmatpush1.xpose.msra.mxu0 0.0
    %1496 = vmatprep.subr.mxu0 0.0
    %1497 = vmatpush1.xpose.msra.mxu0 0.0
    %1498 = vmatprep.subr.mxu0 0.0
    %1499 = vmatpush1.xpose.msra.mxu0 0.0
    %1500 = vmatprep.subr.mxu0 0.0
    %1501 = vmatpush1.xpose.msra.mxu0 0.0
    %1502 = vmatprep.subr.mxu0 0.0
    %1503 = vmatpush1.xpose.msra.mxu0 0.0
    %1504 = vmatprep.subr.mxu0 0.0
    %1505 = vmatpush1.xpose.msra.mxu0 0.0
    %1506 = vmatprep.subr.mxu0 0.0
    %1507 = vmatpush1.xpose.msra.mxu0 0.0
    %1508 = vmatprep.subr.mxu0 0.0
    %1509 = vmatpush1.xpose.msra.mxu0 0.0
    %1510 = vmatprep.subr.mxu0 0.0
    %1511 = vmatpush1.xpose.msra.mxu0 0.0
    %1512 = vmatprep.subr.mxu0 0.0
    %1513 = vmatpush1.xpose.msra.mxu0 0.0
    %1514 = vmatprep.subr.mxu0 0.0
    %1515 = vmatpush1.xpose.msra.mxu0 0.0
    %1516 = vmatprep.subr.mxu0 0.0
    %1517 = vmatpush1.xpose.msra.mxu0 %v1484
    %1518 = vmatprep.subr.mxu0 0.0
    %1519 = vmatpush2.xpose.msra.mxu0 0.0
    %1520 = vmatprep.subr.mxu0 0.0
    %1521 = vmatpush2.xpose.msra.mxu0 0.0
    %1522 = vmatprep.subr.mxu0 0.0
    %1523 = vmatpush2.xpose.msra.mxu0 0.0
    %1524 = vmatprep.subr.mxu0 0.0
    %1525 = vmatpush2.xpose.msra.mxu0 0.0
    %1526 = vmatprep.subr.mxu0 0.0
    %1527 = vmatpush2.xpose.msra.mxu0 0.0
    %1528 = vmatprep.subr.mxu0 0.0
    %1529 = vmatpush2.xpose.msra.mxu0 0.0
    %1530 = vmatprep.subr.mxu0 0.0
    %1531 = vmatpush2.xpose.msra.mxu0 0.0
    %1532 = vmatprep.subr.mxu0 0.0
    %1533 = vmatpush2.xpose.msra.mxu0 0.0
    %1534 = vmatprep.subr.mxu0 0.0
    %1535 = vmatpush2.xpose.msra.mxu0 0.0
    %1536 = vmatprep.subr.mxu0 0.0
    %1537 = vmatpush2.xpose.msra.mxu0 0.0
    %1538 = vmatprep.subr.mxu0 0.0
    %1539 = vmatpush2.xpose.msra.mxu0 0.0
    %1540 = vmatprep.subr.mxu0 0.0
    %1541 = vmatpush2.xpose.msra.mxu0 0.0
    %1542 = vmatprep.subr.mxu0 0.0
    %1543 = vmatpush2.xpose.msra.mxu0 0.0
    %1544 = vmatprep.subr.mxu0 0.0
    %1545 = vmatpush2.xpose.msra.mxu0 0.0
    %1546 = vmatprep.subr.mxu0 0.0
    %1547 = vmatpush2.xpose.msra.mxu0 0.0
    %1548 = vmatprep.subr.mxu0 0.0
    %1549 = vmatpush2.xpose.msra.mxu0 0.0
    %1550 = vmatprep.mubr.f32.mxu0 0.0
    %1551 = vmatmul.mubr.f32.gmra.mxu0 %v1482
    %v1552 = vpop.f32.mrf.mxu0
    %v1553 = vadd.f32 %v162, %v1552
    %v1554 = vpop.f32.mrf.mxu0
    %1555 = vdwg.mxu0
    %v1556 = vsel %vm166, %v1475, -inf
    %1557 = vmax.xlane.f32.xlu0 %v1556
    %v1558 = vpop.xlane.xlu0 %1557
    %v1559 = vsel %vm166, %v1553, -inf
    %1560 = vmax.xlane.f32.xlu0 %v1559
    %v1561 = vpop.xlane.xlu0 %1560
    %v1562 = vsub.f32 %v1475, %v1558
    %v1563 = vsub.f32 %v1553, %v1561
    %v1564 = vmul.f32 %v1562, 1.442695
    %v1565 = vpow.pop %v1564
    %v1566 = vmul.f32 %v1563, 1.442695
    %v1567 = vpow.pop %v1566
    %v1568 = vsel %vm166, %v1565, 0.0
    %1569 = vadd.xlane.f32.xlu0 %v1568
    %v1570 = vpop.xlane.xlu0 %1569
    %v1571 = vsel %vm166, %v1567, 0.0
    %1572 = vadd.xlane.f32.xlu0 %v1571
    %v1573 = vpop.xlane.xlu0 %1572
    %1574 = vrot.lane.b32.xlu0 %v149, 40
    %v1575 = vpop.permute.xlu0 %1574
    %v1578 = vsel %vm166, %v1565, 0
    %1580 = vmatprep.subr.mxu0 0.0
    %1581 = vmatpush1.msra.mxu0 0.0
    %1582 = vmatprep.subr.mxu0 0.0
    %1583 = vmatpush1.msra.mxu0 0.0
    %1584 = vmatprep.subr.mxu0 0.0
    %1585 = vmatpush1.msra.mxu0 0.0
    %1586 = vmatprep.subr.mxu0 0.0
    %1587 = vmatpush1.msra.mxu0 0.0
    %1588 = vmatprep.subr.mxu0 0.0
    %1589 = vmatpush1.msra.mxu0 0.0
    %1590 = vmatprep.subr.mxu0 0.0
    %1591 = vmatpush1.msra.mxu0 0.0
    %1592 = vmatprep.subr.mxu0 0.0
    %1593 = vmatpush1.msra.mxu0 0.0
    %1594 = vmatprep.subr.mxu0 0.0
    %1595 = vmatpush1.msra.mxu0 0.0
    %1596 = vmatprep.subr.mxu0 0.0
    %1597 = vmatpush1.msra.mxu0 0.0
    %1598 = vmatprep.subr.mxu0 0.0
    %1599 = vmatpush1.msra.mxu0 0.0
    %1600 = vmatprep.subr.mxu0 0.0
    %1601 = vmatpush1.msra.mxu0 0.0
    %1602 = vmatprep.subr.mxu0 0.0
    %1603 = vmatpush1.msra.mxu0 0.0
    %1604 = vmatprep.subr.mxu0 0.0
    %1605 = vmatpush1.msra.mxu0 0.0
    %1606 = vmatprep.subr.mxu0 0.0
    %1607 = vmatpush1.msra.mxu0 0.0
    %1608 = vmatprep.subr.mxu0 0.0
    %1609 = vmatpush1.msra.mxu0 0.0
    %1610 = vmatprep.subr.mxu0 0.0
    %1611 = vmatpush1.msra.mxu0 %v1575
    %1612 = vmatprep.subr.mxu0 0.0
    %1613 = vmatpush2.msra.mxu0 0.0
    %1614 = vmatprep.subr.mxu0 0.0
    %1615 = vmatpush2.msra.mxu0 0.0
    %1616 = vmatprep.subr.mxu0 0.0
    %1617 = vmatpush2.msra.mxu0 0.0
    %1618 = vmatprep.subr.mxu0 0.0
    %1619 = vmatpush2.msra.mxu0 0.0
    %1620 = vmatprep.subr.mxu0 0.0
    %1621 = vmatpush2.msra.mxu0 0.0
    %1622 = vmatprep.subr.mxu0 0.0
    %1623 = vmatpush2.msra.mxu0 0.0
    %1624 = vmatprep.subr.mxu0 0.0
    %1625 = vmatpush2.msra.mxu0 0.0
    %1626 = vmatprep.subr.mxu0 0.0
    %1627 = vmatpush2.msra.mxu0 0.0
    %1628 = vmatprep.subr.mxu0 0.0
    %1629 = vmatpush2.msra.mxu0 0.0
    %1630 = vmatprep.subr.mxu0 0.0
    %1631 = vmatpush2.msra.mxu0 0.0
    %1632 = vmatprep.subr.mxu0 0.0
    %1633 = vmatpush2.msra.mxu0 0.0
    %1634 = vmatprep.subr.mxu0 0.0
    %1635 = vmatpush2.msra.mxu0 0.0
    %1636 = vmatprep.subr.mxu0 0.0
    %1637 = vmatpush2.msra.mxu0 0.0
    %1638 = vmatprep.subr.mxu0 0.0
    %1639 = vmatpush2.msra.mxu0 0.0
    %1640 = vmatprep.subr.mxu0 0.0
    %1641 = vmatpush2.msra.mxu0 0.0
    %1642 = vmatprep.subr.mxu0 0.0
    %1643 = vmatpush2.msra.mxu0 0.0
    %1644 = vmatprep.mubr.f32.mxu0 0.0
    %1645 = vmatmul.mubr.f32.gmra.mxu0 %v1578
    %v1646 = vpop.f32.mrf.mxu0
    %v1647 = vadd.f32 0.0, %v1646
    %v1648 = vpop.f32.mrf.mxu0
    %1649 = vdwg.mxu0
    %1650 = vrot.lane.b32.xlu0 %v154, 40
    %v1651 = vpop.permute.xlu0 %1650
    %v1654 = vsel %vm166, %v1567, 0
    %1656 = vmatprep.subr.mxu0 0.0
    %1657 = vmatpush1.msra.mxu0 0.0
    %1658 = vmatprep.subr.mxu0 0.0
    %1659 = vmatpush1.msra.mxu0 0.0
    %1660 = vmatprep.subr.mxu0 0.0
    %1661 = vmatpush1.msra.mxu0 0.0
    %1662 = vmatprep.subr.mxu0 0.0
    %1663 = vmatpush1.msra.mxu0 0.0
    %1664 = vmatprep.subr.mxu0 0.0
    %1665 = vmatpush1.msra.mxu0 0.0
    %1666 = vmatprep.subr.mxu0 0.0
    %1667 = vmatpush1.msra.mxu0 0.0
    %1668 = vmatprep.subr.mxu0 0.0
    %1669 = vmatpush1.msra.mxu0 0.0
    %1670 = vmatprep.subr.mxu0 0.0
    %1671 = vmatpush1.msra.mxu0 0.0
    %1672 = vmatprep.subr.mxu0 0.0
    %1673 = vmatpush1.msra.mxu0 0.0
    %1674 = vmatprep.subr.mxu0 0.0
    %1675 = vmatpush1.msra.mxu0 0.0
    %1676 = vmatprep.subr.mxu0 0.0
    %1677 = vmatpush1.msra.mxu0 0.0
    %1678 = vmatprep.subr.mxu0 0.0
    %1679 = vmatpush1.msra.mxu0 0.0
    %1680 = vmatprep.subr.mxu0 0.0
    %1681 = vmatpush1.msra.mxu0 0.0
    %1682 = vmatprep.subr.mxu0 0.0
    %1683 = vmatpush1.msra.mxu0 0.0
    %1684 = vmatprep.subr.mxu0 0.0
    %1685 = vmatpush1.msra.mxu0 0.0
    %1686 = vmatprep.subr.mxu0 0.0
    %1687 = vmatpush1.msra.mxu0 %v1651
    %1688 = vmatprep.subr.mxu0 0.0
    %1689 = vmatpush2.msra.mxu0 0.0
    %1690 = vmatprep.subr.mxu0 0.0
    %1691 = vmatpush2.msra.mxu0 0.0
    %1692 = vmatprep.subr.mxu0 0.0
    %1693 = vmatpush2.msra.mxu0 0.0
    %1694 = vmatprep.subr.mxu0 0.0
    %1695 = vmatpush2.msra.mxu0 0.0
    %1696 = vmatprep.subr.mxu0 0.0
    %1697 = vmatpush2.msra.mxu0 0.0
    %1698 = vmatprep.subr.mxu0 0.0
    %1699 = vmatpush2.msra.mxu0 0.0
    %1700 = vmatprep.subr.mxu0 0.0
    %1701 = vmatpush2.msra.mxu0 0.0
    %1702 = vmatprep.subr.mxu0 0.0
    %1703 = vmatpush2.msra.mxu0 0.0
    %1704 = vmatprep.subr.mxu0 0.0
    %1705 = vmatpush2.msra.mxu0 0.0
    %1706 = vmatprep.subr.mxu0 0.0
    %1707 = vmatpush2.msra.mxu0 0.0
    %1708 = vmatprep.subr.mxu0 0.0
    %1709 = vmatpush2.msra.mxu0 0.0
    %1710 = vmatprep.subr.mxu0 0.0
    %1711 = vmatpush2.msra.mxu0 0.0
    %1712 = vmatprep.subr.mxu0 0.0
    %1713 = vmatpush2.msra.mxu0 0.0
    %1714 = vmatprep.subr.mxu0 0.0
    %1715 = vmatpush2.msra.mxu0 0.0
    %1716 = vmatprep.subr.mxu0 0.0
    %1717 = vmatpush2.msra.mxu0 0.0
    %1718 = vmatprep.subr.mxu0 0.0
    %1719 = vmatpush2.msra.mxu0 0.0
    %1720 = vmatprep.mubr.f32.mxu0 0.0
    %1721 = vmatmul.mubr.f32.gmra.mxu0 %v1654
    %v1722 = vpop.f32.mrf.mxu0
    %v1723 = vadd.f32 0.0, %v1722
    %v1724 = vpop.f32.mrf.mxu0
    %1725 = vdwg.mxu0
    %v1726 = vrcp.pop %v1570
    %v1727 = vrcp.pop %v1573
    %v1728 = vmul.f32 %v1647, %v1726
    %v1729 = vmul.f32 %v1723, %v1727
    %v1730 = vld [vmem:[#allocation7 + $0x18] sm:$0xff]
    %v1732 = vsel %vm166, %v1728, 0
    %v1735 = vsel %vm166, %v1729, 0
    %1737 = vmatprep.subr.mxu0 0.0
    %1738 = vmatpush1.msra.mxu0 0.0
    %1739 = vmatprep.subr.mxu0 0.0
    %1740 = vmatpush1.msra.mxu0 0.0
    %1741 = vmatprep.subr.mxu0 0.0
    %1742 = vmatpush1.msra.mxu0 0.0
    %1743 = vmatprep.subr.mxu0 0.0
    %1744 = vmatpush1.msra.mxu0 0.0
    %1745 = vmatprep.subr.mxu0 0.0
    %1746 = vmatpush1.msra.mxu0 0.0
    %1747 = vmatprep.subr.mxu0 0.0
    %1748 = vmatpush1.msra.mxu0 0.0
    %1749 = vmatprep.subr.mxu0 0.0
    %1750 = vmatpush1.msra.mxu0 0.0
    %1751 = vmatprep.subr.mxu0 0.0
    %1752 = vmatpush1.msra.mxu0 0.0
    %1753 = vmatprep.subr.mxu0 0.0
    %1754 = vmatpush1.msra.mxu0 0.0
    %1755 = vmatprep.subr.mxu0 0.0
    %1756 = vmatpush1.msra.mxu0 0.0
    %1757 = vmatprep.subr.mxu0 0.0
    %1758 = vmatpush1.msra.mxu0 0.0
    %1759 = vmatprep.subr.mxu0 0.0
    %1760 = vmatpush1.msra.mxu0 0.0
    %1761 = vmatprep.subr.mxu0 0.0
    %1762 = vmatpush1.msra.mxu0 0.0
    %1763 = vmatprep.subr.mxu0 0.0
    %1764 = vmatpush1.msra.mxu0 0.0
    %1765 = vmatprep.subr.mxu0 0.0
    %1766 = vmatpush1.msra.mxu0 0.0
    %1767 = vmatprep.subr.mxu0 0.0
    %1768 = vmatpush1.msra.mxu0 %v1730
    %1769 = vmatprep.subr.mxu0 0.0
    %1770 = vmatpush2.msra.mxu0 0.0
    %1771 = vmatprep.subr.mxu0 0.0
    %1772 = vmatpush2.msra.mxu0 0.0
    %1773 = vmatprep.subr.mxu0 0.0
    %1774 = vmatpush2.msra.mxu0 0.0
    %1775 = vmatprep.subr.mxu0 0.0
    %1776 = vmatpush2.msra.mxu0 0.0
    %1777 = vmatprep.subr.mxu0 0.0
    %1778 = vmatpush2.msra.mxu0 0.0
    %1779 = vmatprep.subr.mxu0 0.0
    %1780 = vmatpush2.msra.mxu0 0.0
    %1781 = vmatprep.subr.mxu0 0.0
    %1782 = vmatpush2.msra.mxu0 0.0
    %1783 = vmatprep.subr.mxu0 0.0
    %1784 = vmatpush2.msra.mxu0 0.0
    %1785 = vmatprep.subr.mxu0 0.0
    %1786 = vmatpush2.msra.mxu0 0.0
    %1787 = vmatprep.subr.mxu0 0.0
    %1788 = vmatpush2.msra.mxu0 0.0
    %1789 = vmatprep.subr.mxu0 0.0
    %1790 = vmatpush2.msra.mxu0 0.0
    %1791 = vmatprep.subr.mxu0 0.0
    %1792 = vmatpush2.msra.mxu0 0.0
    %1793 = vmatprep.subr.mxu0 0.0
    %1794 = vmatpush2.msra.mxu0 0.0
    %1795 = vmatprep.subr.mxu0 0.0
    %1796 = vmatpush2.msra.mxu0 0.0
    %1797 = vmatprep.subr.mxu0 0.0
    %1798 = vmatpush2.msra.mxu0 0.0
    %1799 = vmatprep.subr.mxu0 0.0
    %1800 = vmatpush2.msra.mxu0 0.0
    %1801 = vmatprep.mubr.f32.mxu0 0.0
    %1802 = vmatmul.mubr.f32.gmra.mxu0 %v1732
    %v1803 = vpop.f32.mrf.mxu0
    %v1804 = vadd.f32 0.0, %v1803
    %v1805 = vpop.f32.mrf.mxu0
    %1806 = vmatprep.mubr.f32.mxu0 0.0
    %1807 = vmatmul.mubr.f32.gmra.mxu0 %v1735
    %v1808 = vpop.f32.mrf.mxu0
    %v1809 = vadd.f32 0.0, %v1808
    %v1810 = vpop.f32.mrf.mxu0
    %1811 = vdwg.mxu0
    %v1812 = vadd.f32 %v1398, %v1804
    %v1813 = vadd.f32 %v1399, %v1809
    %v1814 = vld [vmem:[%s4] sm:$0x1]
    %v1816 = vlaneseq
    %v1817 = vshrl.u32 %v1816, 7
    %v1818 = vsub.s32 0, %v1817
    %v1819 = vrot.slane %v1814, %v1818
    %v1821 = vadd.f32 %v1812, %v1819
    %v1822 = vadd.f32 %v1813, %v1819
    %1823 = vst.msk [vmem:[#allocation8] sm:$0xff] %vm75, %v1821
    %1824 = vst.msk [vmem:[#allocation8 + $0x8] sm:$0xff] %vm75, %v1822
    // Predicated region
    $region34: #{tpu_custom_call.1} parent=1 // pred_check
      _
    $region35: #{tpu_custom_call.1} parent=1 // pred_check_branch
      %1826 = sbr.rel (0) target = $region37
    $region36: #{tpu_custom_call.1} parent=1 // pred_region
      %s1828 = ssub.s32 256, 256
      %1829 = vsyncadd [#allocation4], %s1828
      %s1830 = sshll.u32 [#allocation8], 4
      %s1831 = int_to_ptr.vmem [resolvable:$true] %s1830
      %1836 = dma.vmem_to_hbm [thread:$0]  %s1831, 256, %s5, [#allocation4], 128, 128, 8
    $region37: #{tpu_custom_call.1} parent=1 // pred_fallthru
      _
    // Predicated region
    $region38: #{tpu_custom_call.1} parent=1 // pred_check
      _
    $region39: #{tpu_custom_call.1} parent=1 // pred_check_branch
      %1838 = sbr.rel (0) target = $region41
    $region40: #{tpu_custom_call.1} parent=1 // pred_region
      %1839 = dma.done [#allocation4], 256
    $region41: #{tpu_custom_call.1} parent=1 // pred_fallthru
      _
    %1840 = vsyncpa [#allocation3], 1
    %1841 = vsyncpa [#allocation6], 1
    %1842 = vsyncpa [#allocation4], 1

</llo_original>
